<compile_context>
chip_gen: v7x
topology: tpu7x:2x2x1
jax: 0.10.0
libtpu: 0.0.40
codegen_flags: <defaults>
</compile_context>

<pallas_src>
import jax
import jax.numpy as jnp
from jax.experimental import pallas as pl
from jax.experimental.pallas import tpu as pltpu


# ----------------------------- packing layout ------------------------------ #
M_T2G, M_C3P, M_CE = range(3)                  # mats   (3, C, C)
B_T2G, B_T2D, B_C3D, B_C3P, B_CE = range(5)    # biases (5, C, 1)
T_T2D, T_C3D = 0, 9                            # tap row offsets in (18, C, 1)


def _round_up(a, m):
    return -(-a // m) * m


def _pack_dims(C):
    """Sublane layout of the fused [x_r; h] matmul: x-rows at 0, h-rows at a
    tile-aligned offset, a constant-ones row for the folded biases."""
    off_h = _round_up(C, 8)            # h rows start here (tile-aligned)
    one_row = off_h + C                # constant-ones row index in the RHS
    rpad = _round_up(one_row + 1, 8)   # padded packed dimension
    return off_h, one_row, rpad


# ----------------------------- Pallas kernel ------------------------------ #
def _make_mdab_kernel(H, W, nb):
    HW = H * W
    NHW = nb * HW                      # lanes per grid step (nb images)

    def kernel(x_ref, mats_ref, wpack_ref, taps_ref, bias_ref, o_ref):
        C = x_ref.shape[0]
        off_h, one_row, rpad = _pack_dims(C)

        def mm(w, a):
            # 1x1 conv == (Cout, Cin) @ (Cin, NHW) on the MXU
            return jnp.dot(w, a, preferred_element_type=jnp.float32)

        # ---- boundary masks for the depthwise 3x3 (computed once; default
        #      grid has a single step).  row/col are per-image so rolls never
        #      read across the images packed along the lane axis. ----
        lane = jax.lax.broadcasted_iota(jnp.int32, (1, NHW), 1)
        if W & (W - 1) == 0:
            col = jnp.bitwise_and(lane, W - 1)
            rowq = jnp.right_shift(lane, W.bit_length() - 1)
        else:
            col = lane % W
            rowq = lane // W
        row = jnp.bitwise_and(rowq, H - 1) if H & (H - 1) == 0 else rowq % H
        row_ok = {-1: row >= 1, 0: None, 1: row <= H - 2}
        col_ok = {-1: col >= 1, 0: None, 1: col <= W - 2}
        masks = []
        for k in range(9):
            dy, dx = k // 3 - 1, k % 3 - 1
            r, c = row_ok[dy], col_ok[dx]
            if r is None and c is None:
                masks.append(None)
            elif r is None:
                masks.append(c)
            elif c is None:
                masks.append(r)
            else:
                masks.append(jnp.logical_and(r, c))

        def depthwise3x3(g, tap_off, bias):
            # depthwise 3x3, padding=1: 9 static lane rolls + masked MACs.
            # Taps are (C,1) leading-dim loads, hoisted out of the roll loop.
            taps = [taps_ref[tap_off + k] for k in range(9)]
            acc = None
            for k in range(9):
                dy, dx = k // 3 - 1, k % 3 - 1
                s = dy * W + dx                       # lane offset of the tap
                v = g if s == 0 else pltpu.roll(g, (-s) % NHW, axis=1)
                if masks[k] is not None:
                    v = jnp.where(masks[k], v, 0.0)
                term = v * taps[k]
                acc = term if acc is None else acc + term
            return acc + bias

        x = x_ref[...]                                 # (C, NHW) f32

        # tail2: grouped 1x1 (densified block-diag) -> depthwise 3x3
        g = mm(mats_ref[M_T2G], x) + bias_ref[B_T2G]
        d = depthwise3x3(g, T_T2D, bias_ref[B_T2D])

        # conv(cat([tail1(x), tail2.point(d)])) and conv3.group_conv(cat(...))
        # fused into ONE MXU dot: W_pack @ [x; 0; d; 1; 0].  Biases b_A/b_B
        # are folded in via the ones row; h rows start at a tile-aligned
        # sublane offset so the output split needs no relayout.
        pieces = [x]
        if off_h > C:
            pieces.append(jnp.zeros((off_h - C, NHW), jnp.float32))
        pieces.append(d)
        pieces.append(jnp.ones((1, NHW), jnp.float32))
        if rpad > one_row + 1:
            pieces.append(jnp.zeros((rpad - one_row - 1, NHW), jnp.float32))
        rhs = jnp.concatenate(pieces, axis=0)          # (rpad, NHW)
        xr_h = mm(wpack_ref[...], rhs)                 # (rpad, NHW)
        x_r = xr_h[0:C]
        h = xr_h[off_h:off_h + C]

        # ConvBlock conv3 tail: depthwise 3x3 -> point 1x1
        hd = depthwise3x3(h, T_C3D, bias_ref[B_C3D])
        xa = mm(mats_ref[M_C3P], hd) + bias_ref[B_C3P]

        # soft_c: softmax over channels (sublane axis)
        e_c = jnp.exp(xa - jnp.max(xa, axis=0, keepdims=True))
        a1 = e_c * pl.reciprocal(jnp.sum(e_c, axis=0, keepdims=True),
                                 approx=True)

        # soft_hw: softmax over flattened H*W, per packed image segment
        # (static, 128-aligned lane slices)
        segs = []
        for bi in range(nb):
            seg = xa[:, bi * HW:(bi + 1) * HW]
            e_h = jnp.exp(seg - jnp.max(seg, axis=1, keepdims=True))
            segs.append(e_h * pl.reciprocal(
                jnp.sum(e_h, axis=1, keepdims=True), approx=True))
        a2 = segs[0] if nb == 1 else jnp.concatenate(segs, axis=1)

        out = x_r * (a1 + a2)                          # fused combine
        o_ref[...] = mm(mats_ref[M_CE], out) + bias_ref[B_CE]   # conv_end

    return kernel


# ------------------------------- wrapper ----------------------------------- #
def mdab_pallas(x_nchw, p, batch_tile=None):
    B, C, H, W = x_nchw.shape
    HW = H * W
    if batch_tile is None:
        # One grid step with the whole batch on the lane axis is best on
        # single-TensorCore parts (v5e/v6e).  On v7x choose batch_tile < B so
        # the "parallel" grid keeps both TensorCores busy.
        batch_tile = B
    nb = batch_tile
    assert B % nb == 0
    # One-off cheap transpose to a channels-first, lane-dense (C, B*HW) slab.
    x = x_nchw.reshape(B, C, HW).transpose(1, 0, 2).reshape(C, B * HW)
    mats, wpack, taps, biases = p["mats"], p["wpack"], p["taps"], p["biases"]
    out = pl.pallas_call(
        _make_mdab_kernel(H, W, nb),
        out_shape=jax.ShapeDtypeStruct((C, B * HW), jnp.float32),
        grid=(B // nb,),
        in_specs=[
            pl.BlockSpec((C, nb * HW), lambda i: (0, i)),
            pl.BlockSpec(mats.shape, lambda i: (0, 0, 0)),
            pl.BlockSpec(wpack.shape, lambda i: (0, 0)),
            pl.BlockSpec(taps.shape, lambda i: (0, 0, 0)),
            pl.BlockSpec(biases.shape, lambda i: (0, 0, 0)),
        ],
        out_specs=pl.BlockSpec((C, nb * HW), lambda i: (0, i)),
        compiler_params=pltpu.CompilerParams(
            dimension_semantics=("parallel",)),
    )(x, mats, wpack, taps, biases)
    return out.reshape(C, B, HW).transpose(1, 0, 2).reshape(B, C, H, W)


# -------------------------- parameter construction ------------------------- #
def _weight_norm(v, g):
    # PyTorch weight_norm: w = g * v / ||v||, norm over all dims except dim 0
    norm = jnp.sqrt(jnp.sum(v * v, axis=tuple(range(1, v.ndim)), keepdims=True))
    return v / norm * g.reshape((-1,) + (1,) * (v.ndim - 1))


def _make_conv(key, cout, cin_per_group, kh, kw):
    k1, k2, k3 = jax.random.split(key, 3)
    v = 0.2 * jax.random.normal(k1, (cout, cin_per_group, kh, kw), jnp.float32)
    g = 1.0 + 0.1 * jax.random.normal(k2, (cout,), jnp.float32)
    b = 0.05 * jax.random.normal(k3, (cout,), jnp.float32)
    return _weight_norm(v, g), b


def _group_dense(w, groups):
    cout, cin_pg = w.shape[0], w.shape[1]
    per_out = cout // groups
    dense = jnp.zeros((cout, cin_pg * groups), jnp.float32)
    for gi in range(groups):
        dense = dense.at[gi * per_out:(gi + 1) * per_out,
                         gi * cin_pg:(gi + 1) * cin_pg].set(
            w[gi * per_out:(gi + 1) * per_out, :, 0, 0])
    return dense


def _hmm(a, b):
    return jnp.matmul(a, b, precision=jax.lax.Precision.HIGHEST)


def init_params(key, n_feats, groups=3):
    C = n_feats
    half = C // 2
    ks = jax.random.split(key, 9)
    convs = {
        "t1":  _make_conv(ks[0], half, C, 1, 1),          # tail1
        "t2g": _make_conv(ks[1], C, C // groups, 1, 1),   # tail2.group_conv
        "t2d": _make_conv(ks[2], C, 1, 3, 3),             # tail2.depth_conv
        "t2p": _make_conv(ks[3], half, C, 1, 1),          # tail2.point_conv
        "cv":  _make_conv(ks[4], C, C, 1, 1),             # conv
        "c3g": _make_conv(ks[5], C, C // groups, 1, 1),   # conv3.group_conv
        "c3d": _make_conv(ks[6], C, 1, 3, 3),             # conv3.depth_conv
        "c3p": _make_conv(ks[7], C, C, 1, 1),             # conv3.point_conv
        "ce":  _make_conv(ks[8], C, C, 1, 1),             # conv_end
    }
    torch_p = {}
    for name, (w, b) in convs.items():
        torch_p[name + "_w"] = w
        torch_p[name + "_b"] = b

    # dense (Cout, Cin) channels-first matrices
    W_t1, b_t1 = convs["t1"][0][:, :, 0, 0], convs["t1"][1]
    W_t2g, b_t2g = _group_dense(convs["t2g"][0], groups), convs["t2g"][1]
    taps_t2d, b_t2d = convs["t2d"][0][:, 0, :, :].reshape(C, 9), convs["t2d"][1]
    W_t2p, b_t2p = convs["t2p"][0][:, :, 0, 0], convs["t2p"][1]
    W_cv, b_cv = convs["cv"][0][:, :, 0, 0], convs["cv"][1]
    W_c3g, b_c3g = _group_dense(convs["c3g"][0], groups), convs["c3g"][1]
    taps_c3d, b_c3d = convs["c3d"][0][:, 0, :, :].reshape(C, 9), convs["c3d"][1]
    W_c3p, b_c3p = convs["c3p"][0][:, :, 0, 0], convs["c3p"][1]
    W_ce, b_ce = convs["ce"][0][:, :, 0, 0], convs["ce"][1]

    # Fold tail1 / tail2.point_conv into conv and conv3.group_conv
    # (no nonlinearity between them): kills x1, x_c and the concat.
    A_x = _hmm(W_cv[:, :half], W_t1)
    A_d = _hmm(W_cv[:, half:], W_t2p)
    b_A = _hmm(W_cv[:, :half], b_t1) + _hmm(W_cv[:, half:], b_t2p) + b_cv
    B_x = _hmm(W_c3g[:, :half], W_t1)
    B_d = _hmm(W_c3g[:, half:], W_t2p)
    b_B = _hmm(W_c3g[:, :half], b_t1) + _hmm(W_c3g[:, half:], b_t2p) + b_c3g

    # Packed weight for the single fused x_r / h matmul, with the h rows
    # starting at a tile-aligned sublane offset and the biases in the column
    # that multiplies the constant-ones RHS row.
    off_h, one_row, rpad = _pack_dims(C)
    wpack = jnp.zeros((rpad, rpad), jnp.float32)
    wpack = wpack.at[0:C, 0:C].set(A_x)
    wpack = wpack.at[0:C, off_h:off_h + C].set(A_d)
    wpack = wpack.at[0:C, one_row].set(b_A)
    wpack = wpack.at[off_h:off_h + C, 0:C].set(B_x)
    wpack = wpack.at[off_h:off_h + C, off_h:off_h + C].set(B_d)
    wpack = wpack.at[off_h:off_h + C, one_row].set(b_B)

    mats = jnp.stack([W_t2g, W_c3p, W_ce], axis=0)                    # (3,C,C)
    taps = jnp.concatenate([jnp.transpose(taps_t2d),
                            jnp.transpose(taps_c3d)], axis=0)[..., None]  # (18,C,1)
    biases = jnp.stack([b_t2g, b_t2d, b_c3d, b_c3p, b_ce],
                       axis=0)[..., None]                             # (5,C,1)

    kern_p = {"mats": mats, "wpack": wpack, "taps": taps, "biases": biases}
    return torch_p, kern_p


# ------------------------- pure-JAX NCHW reference ------------------------- #
def _conv2d_ref(x, w, b, groups=1, padding=0):
    y = jax.lax.conv_general_dilated(
        x, w, (1, 1), [(padding, padding), (padding, padding)],
        dimension_numbers=("NCHW", "OIHW", "NCHW"),
        feature_group_count=groups,
        precision=jax.lax.Precision.HIGHEST)
    return y + b.reshape(1, -1, 1, 1)


def mdab_ref(x, tp, groups=3):
    b, c, h, w = x.shape
    x1 = _conv2d_ref(x, tp["t1_w"], tp["t1_b"])
    x2 = _conv2d_ref(x, tp["t2g_w"], tp["t2g_b"], groups=groups)
    x2 = _conv2d_ref(x2, tp["t2d_w"], tp["t2d_b"], groups=c, padding=1)
    x2 = _conv2d_ref(x2, tp["t2p_w"], tp["t2p_b"])
    xc = jnp.concatenate([x1, x2], axis=1)
    x_r = _conv2d_ref(xc, tp["cv_w"], tp["cv_b"])
    xa = _conv2d_ref(xc, tp["c3g_w"], tp["c3g_b"], groups=groups)
    xa = _conv2d_ref(xa, tp["c3d_w"], tp["c3d_b"], groups=c, padding=1)
    xa = _conv2d_ref(xa, tp["c3p_w"], tp["c3p_b"])
    a1 = jax.nn.softmax(xa, axis=1)
    a2 = jax.nn.softmax(xa.reshape(b, c, -1), axis=2).reshape(b, c, h, w)
    out = x_r * a1 + x_r * a2
    return _conv2d_ref(out, tp["ce_w"], tp["ce_b"])


# ----------------------------------- main ---------------------------------- #
if __name__ == "__main__":
    # n_feats must be divisible by 3 (ConvBlock groups) and by 2 (tail split).
    B, C, H, W = 2, 12, 16, 16          # MDAB(n_feats=12, scale=2, n_colors=3)
    key = jax.random.PRNGKey(0)
    kx, kp = jax.random.split(key)
    x_nchw = jax.random.normal(kx, (B, C, H, W), jnp.float32)

    torch_p, kern_p = init_params(kp, C)

    out_nchw = mdab_pallas(x_nchw, kern_p)
    jax.block_until_ready(out_nchw)

    ref = mdab_ref(x_nchw, torch_p)
    max_err = float(jnp.max(jnp.abs(out_nchw - ref)))
    assert max_err < 2e-2, max_err
    print("KERNEL_OK")
</pallas_src>

<mosaic_0001>
module attributes {stable_mosaic.version = 11 : i64} {
  func.func @kernel(%arg0: i32, %arg1: memref<12x512xf32, #tpu.memory_space<vmem>>, %arg2: memref<3x12x12xf32, #tpu.memory_space<vmem>>, %arg3: memref<32x32xf32, #tpu.memory_space<vmem>>, %arg4: memref<18x12x1xf32, #tpu.memory_space<vmem>>, %arg5: memref<5x12x1xf32, #tpu.memory_space<vmem>>, %arg6: memref<12x512xf32, #tpu.memory_space<vmem>>) attributes {dimension_semantics = [#tpu.dimension_semantics<parallel>], iteration_bounds = array<i64: 1>, scalar_prefetch = 0 : i64, scratch_operands = 0 : i64, tpu.core_type = #tpu.core_type<tc>, window_params = [{transform_indices = @transform_0, window_bounds = array<i64: 12, 512>}, {pipeline_mode = #tpu.pipeline_mode<synchronous>, transform_indices = @transform_1, window_bounds = array<i64: 3, 12, 12>}, {pipeline_mode = #tpu.pipeline_mode<synchronous>, transform_indices = @transform_2, window_bounds = array<i64: 32, 32>}, {pipeline_mode = #tpu.pipeline_mode<synchronous>, transform_indices = @transform_3, window_bounds = array<i64: 18, 12, 1>}, {pipeline_mode = #tpu.pipeline_mode<synchronous>, transform_indices = @transform_4, window_bounds = array<i64: 5, 12, 1>}, {transform_indices = @transform_5, window_bounds = array<i64: 12, 512>}]} {
    %0 = tpu.iota {dimensions = array<i32: 1>} : vector<1x512xi32>
    %c15_i32 = arith.constant 15 : i32
    %1 = vector.broadcast %c15_i32 : i32 to vector<1x512xi32>
    %2 = arith.andi %0, %1 : vector<1x512xi32>
    %c4_i32 = arith.constant 4 : i32
    %3 = vector.broadcast %c4_i32 : i32 to vector<1x512xi32>
    %4 = arith.shrsi %0, %3 : vector<1x512xi32>
    %c15_i32_0 = arith.constant 15 : i32
    %5 = vector.broadcast %c15_i32_0 : i32 to vector<1x512xi32>
    %6 = arith.andi %4, %5 : vector<1x512xi32>
    %c1_i32 = arith.constant 1 : i32
    %7 = vector.broadcast %c1_i32 : i32 to vector<1x512xi32>
    %8 = arith.cmpi sge, %6, %7 : vector<1x512xi32>
    %c14_i32 = arith.constant 14 : i32
    %9 = vector.broadcast %c14_i32 : i32 to vector<1x512xi32>
    %10 = arith.cmpi sle, %6, %9 : vector<1x512xi32>
    %c1_i32_1 = arith.constant 1 : i32
    %11 = vector.broadcast %c1_i32_1 : i32 to vector<1x512xi32>
    %12 = arith.cmpi sge, %2, %11 : vector<1x512xi32>
    %c14_i32_2 = arith.constant 14 : i32
    %13 = vector.broadcast %c14_i32_2 : i32 to vector<1x512xi32>
    %14 = arith.cmpi sle, %2, %13 : vector<1x512xi32>
    %15 = arith.andi %8, %12 : vector<1x512xi1>
    %16 = arith.andi %8, %14 : vector<1x512xi1>
    %17 = arith.andi %10, %12 : vector<1x512xi1>
    %18 = arith.andi %10, %14 : vector<1x512xi1>
    %c0 = arith.constant 0 : index
    %c0_3 = arith.constant 0 : index
    %19 = vector.load %arg1[%c0, %c0_3] : memref<12x512xf32, #tpu.memory_space<vmem>>, vector<12x512xf32>
    %c0_4 = arith.constant 0 : index
    %c0_5 = arith.constant 0 : index
    %c0_6 = arith.constant 0 : index
    %20 = vector.load %arg2[%c0_4, %c0_5, %c0_6] : memref<3x12x12xf32, #tpu.memory_space<vmem>>, vector<1x12x12xf32>
    %21 = vector.shape_cast %20 : vector<1x12x12xf32> to vector<12x12xf32>
    %cst = arith.constant dense<0.000000e+00> : vector<12x512xf32>
    %22 = tpu.matmul %21, %19, %cst {dimension_numbers = #tpu.dot_dimension_numbers<[1], [0], [0], [1], [0, 0, 1, 1], [], []>} : vector<12x12xf32>, vector<12x512xf32>, vector<12x512xf32> -> vector<12x512xf32>
    %c0_7 = arith.constant 0 : index
    %c0_8 = arith.constant 0 : index
    %c0_9 = arith.constant 0 : index
    %23 = vector.load %arg5[%c0_7, %c0_8, %c0_9] : memref<5x12x1xf32, #tpu.memory_space<vmem>>, vector<1x12x1xf32>
    %24 = vector.shape_cast %23 : vector<1x12x1xf32> to vector<12x1xf32>
    %25 = vector.broadcast %24 : vector<12x1xf32> to vector<12x512xf32>
    %26 = arith.addf %22, %25 : vector<12x512xf32>
    %c1 = arith.constant 1 : index
    %c0_10 = arith.constant 0 : index
    %c0_11 = arith.constant 0 : index
    %27 = vector.load %arg5[%c1, %c0_10, %c0_11] : memref<5x12x1xf32, #tpu.memory_space<vmem>>, vector<1x12x1xf32>
    %28 = vector.shape_cast %27 : vector<1x12x1xf32> to vector<12x1xf32>
    %c0_12 = arith.constant 0 : index
    %c0_13 = arith.constant 0 : index
    %c0_14 = arith.constant 0 : index
    %29 = vector.load %arg4[%c0_12, %c0_13, %c0_14] : memref<18x12x1xf32, #tpu.memory_space<vmem>>, vector<1x12x1xf32>
    %30 = vector.shape_cast %29 : vector<1x12x1xf32> to vector<12x1xf32>
    %c1_15 = arith.constant 1 : index
    %c0_16 = arith.constant 0 : index
    %c0_17 = arith.constant 0 : index
    %31 = vector.load %arg4[%c1_15, %c0_16, %c0_17] : memref<18x12x1xf32, #tpu.memory_space<vmem>>, vector<1x12x1xf32>
    %32 = vector.shape_cast %31 : vector<1x12x1xf32> to vector<12x1xf32>
    %c2 = arith.constant 2 : index
    %c0_18 = arith.constant 0 : index
    %c0_19 = arith.constant 0 : index
    %33 = vector.load %arg4[%c2, %c0_18, %c0_19] : memref<18x12x1xf32, #tpu.memory_space<vmem>>, vector<1x12x1xf32>
    %34 = vector.shape_cast %33 : vector<1x12x1xf32> to vector<12x1xf32>
    %c3 = arith.constant 3 : index
    %c0_20 = arith.constant 0 : index
    %c0_21 = arith.constant 0 : index
    %35 = vector.load %arg4[%c3, %c0_20, %c0_21] : memref<18x12x1xf32, #tpu.memory_space<vmem>>, vector<1x12x1xf32>
    %36 = vector.shape_cast %35 : vector<1x12x1xf32> to vector<12x1xf32>
    %c4 = arith.constant 4 : index
    %c0_22 = arith.constant 0 : index
    %c0_23 = arith.constant 0 : index
    %37 = vector.load %arg4[%c4, %c0_22, %c0_23] : memref<18x12x1xf32, #tpu.memory_space<vmem>>, vector<1x12x1xf32>
    %38 = vector.shape_cast %37 : vector<1x12x1xf32> to vector<12x1xf32>
    %c5 = arith.constant 5 : index
    %c0_24 = arith.constant 0 : index
    %c0_25 = arith.constant 0 : index
    %39 = vector.load %arg4[%c5, %c0_24, %c0_25] : memref<18x12x1xf32, #tpu.memory_space<vmem>>, vector<1x12x1xf32>
    %40 = vector.shape_cast %39 : vector<1x12x1xf32> to vector<12x1xf32>
    %c6 = arith.constant 6 : index
    %c0_26 = arith.constant 0 : index
    %c0_27 = arith.constant 0 : index
    %41 = vector.load %arg4[%c6, %c0_26, %c0_27] : memref<18x12x1xf32, #tpu.memory_space<vmem>>, vector<1x12x1xf32>
    %42 = vector.shape_cast %41 : vector<1x12x1xf32> to vector<12x1xf32>
    %c7 = arith.constant 7 : index
    %c0_28 = arith.constant 0 : index
    %c0_29 = arith.constant 0 : index
    %43 = vector.load %arg4[%c7, %c0_28, %c0_29] : memref<18x12x1xf32, #tpu.memory_space<vmem>>, vector<1x12x1xf32>
    %44 = vector.shape_cast %43 : vector<1x12x1xf32> to vector<12x1xf32>
    %c8 = arith.constant 8 : index
    %c0_30 = arith.constant 0 : index
    %c0_31 = arith.constant 0 : index
    %45 = vector.load %arg4[%c8, %c0_30, %c0_31] : memref<18x12x1xf32, #tpu.memory_space<vmem>>, vector<1x12x1xf32>
    %46 = vector.shape_cast %45 : vector<1x12x1xf32> to vector<12x1xf32>
    %c17_i32 = arith.constant 17 : i32
    %47 = tpu.dynamic_rotate %26 by %c17_i32 dim 1 : vector<12x512xf32>, i32 -> vector<12x512xf32>
    %cst_32 = arith.constant 0.000000e+00 : f32
    %48 = vector.shape_cast %15 : vector<1x512xi1> to vector<1x512xi1>
    %49 = vector.broadcast %48 : vector<1x512xi1> to vector<12x512xi1>
    %50 = vector.broadcast %cst_32 : f32 to vector<12x512xf32>
    %51 = arith.select %49, %47, %50 : vector<12x512xi1>, vector<12x512xf32>
    %52 = vector.broadcast %30 : vector<12x1xf32> to vector<12x512xf32>
    %53 = arith.mulf %51, %52 : vector<12x512xf32>
    %c16_i32 = arith.constant 16 : i32
    %54 = tpu.dynamic_rotate %26 by %c16_i32 dim 1 : vector<12x512xf32>, i32 -> vector<12x512xf32>
    %cst_33 = arith.constant 0.000000e+00 : f32
    %55 = vector.shape_cast %8 : vector<1x512xi1> to vector<1x512xi1>
    %56 = vector.broadcast %55 : vector<1x512xi1> to vector<12x512xi1>
    %57 = vector.broadcast %cst_33 : f32 to vector<12x512xf32>
    %58 = arith.select %56, %54, %57 : vector<12x512xi1>, vector<12x512xf32>
    %59 = vector.broadcast %32 : vector<12x1xf32> to vector<12x512xf32>
    %60 = arith.mulf %58, %59 : vector<12x512xf32>
    %61 = arith.addf %53, %60 : vector<12x512xf32>
    %c15_i32_34 = arith.constant 15 : i32
    %62 = tpu.dynamic_rotate %26 by %c15_i32_34 dim 1 : vector<12x512xf32>, i32 -> vector<12x512xf32>
    %cst_35 = arith.constant 0.000000e+00 : f32
    %63 = vector.shape_cast %16 : vector<1x512xi1> to vector<1x512xi1>
    %64 = vector.broadcast %63 : vector<1x512xi1> to vector<12x512xi1>
    %65 = vector.broadcast %cst_35 : f32 to vector<12x512xf32>
    %66 = arith.select %64, %62, %65 : vector<12x512xi1>, vector<12x512xf32>
    %67 = vector.broadcast %34 : vector<12x1xf32> to vector<12x512xf32>
    %68 = arith.mulf %66, %67 : vector<12x512xf32>
    %69 = arith.addf %61, %68 : vector<12x512xf32>
    %c1_i32_36 = arith.constant 1 : i32
    %70 = tpu.dynamic_rotate %26 by %c1_i32_36 dim 1 : vector<12x512xf32>, i32 -> vector<12x512xf32>
    %cst_37 = arith.constant 0.000000e+00 : f32
    %71 = vector.shape_cast %12 : vector<1x512xi1> to vector<1x512xi1>
    %72 = vector.broadcast %71 : vector<1x512xi1> to vector<12x512xi1>
    %73 = vector.broadcast %cst_37 : f32 to vector<12x512xf32>
    %74 = arith.select %72, %70, %73 : vector<12x512xi1>, vector<12x512xf32>
    %75 = vector.broadcast %36 : vector<12x1xf32> to vector<12x512xf32>
    %76 = arith.mulf %74, %75 : vector<12x512xf32>
    %77 = arith.addf %69, %76 : vector<12x512xf32>
    %78 = vector.broadcast %38 : vector<12x1xf32> to vector<12x512xf32>
    %79 = arith.mulf %26, %78 : vector<12x512xf32>
    %80 = arith.addf %77, %79 : vector<12x512xf32>
    %c511_i32 = arith.constant 511 : i32
    %81 = tpu.dynamic_rotate %26 by %c511_i32 dim 1 : vector<12x512xf32>, i32 -> vector<12x512xf32>
    %cst_38 = arith.constant 0.000000e+00 : f32
    %82 = vector.shape_cast %14 : vector<1x512xi1> to vector<1x512xi1>
    %83 = vector.broadcast %82 : vector<1x512xi1> to vector<12x512xi1>
    %84 = vector.broadcast %cst_38 : f32 to vector<12x512xf32>
    %85 = arith.select %83, %81, %84 : vector<12x512xi1>, vector<12x512xf32>
    %86 = vector.broadcast %40 : vector<12x1xf32> to vector<12x512xf32>
    %87 = arith.mulf %85, %86 : vector<12x512xf32>
    %88 = arith.addf %80, %87 : vector<12x512xf32>
    %c497_i32 = arith.constant 497 : i32
    %89 = tpu.dynamic_rotate %26 by %c497_i32 dim 1 : vector<12x512xf32>, i32 -> vector<12x512xf32>
    %cst_39 = arith.constant 0.000000e+00 : f32
    %90 = vector.shape_cast %17 : vector<1x512xi1> to vector<1x512xi1>
    %91 = vector.broadcast %90 : vector<1x512xi1> to vector<12x512xi1>
    %92 = vector.broadcast %cst_39 : f32 to vector<12x512xf32>
    %93 = arith.select %91, %89, %92 : vector<12x512xi1>, vector<12x512xf32>
    %94 = vector.broadcast %42 : vector<12x1xf32> to vector<12x512xf32>
    %95 = arith.mulf %93, %94 : vector<12x512xf32>
    %96 = arith.addf %88, %95 : vector<12x512xf32>
    %c496_i32 = arith.constant 496 : i32
    %97 = tpu.dynamic_rotate %26 by %c496_i32 dim 1 : vector<12x512xf32>, i32 -> vector<12x512xf32>
    %cst_40 = arith.constant 0.000000e+00 : f32
    %98 = vector.shape_cast %10 : vector<1x512xi1> to vector<1x512xi1>
    %99 = vector.broadcast %98 : vector<1x512xi1> to vector<12x512xi1>
    %100 = vector.broadcast %cst_40 : f32 to vector<12x512xf32>
    %101 = arith.select %99, %97, %100 : vector<12x512xi1>, vector<12x512xf32>
    %102 = vector.broadcast %44 : vector<12x1xf32> to vector<12x512xf32>
    %103 = arith.mulf %101, %102 : vector<12x512xf32>
    %104 = arith.addf %96, %103 : vector<12x512xf32>
    %c495_i32 = arith.constant 495 : i32
    %105 = tpu.dynamic_rotate %26 by %c495_i32 dim 1 : vector<12x512xf32>, i32 -> vector<12x512xf32>
    %cst_41 = arith.constant 0.000000e+00 : f32
    %106 = vector.shape_cast %18 : vector<1x512xi1> to vector<1x512xi1>
    %107 = vector.broadcast %106 : vector<1x512xi1> to vector<12x512xi1>
    %108 = vector.broadcast %cst_41 : f32 to vector<12x512xf32>
    %109 = arith.select %107, %105, %108 : vector<12x512xi1>, vector<12x512xf32>
    %110 = vector.broadcast %46 : vector<12x1xf32> to vector<12x512xf32>
    %111 = arith.mulf %109, %110 : vector<12x512xf32>
    %112 = arith.addf %104, %111 : vector<12x512xf32>
    %113 = vector.broadcast %28 : vector<12x1xf32> to vector<12x512xf32>
    %114 = arith.addf %112, %113 : vector<12x512xf32>
    %cst_42 = arith.constant 0.000000e+00 : f32
    %115 = vector.broadcast %cst_42 : f32 to vector<4x512xf32>
    %cst_43 = arith.constant 1.000000e+00 : f32
    %116 = vector.broadcast %cst_43 : f32 to vector<1x512xf32>
    %cst_44 = arith.constant 0.000000e+00 : f32
    %117 = vector.broadcast %cst_44 : f32 to vector<3x512xf32>
    %118 = tpu.concatenate %19, %115, %114, %116, %117 in 0 : vector<12x512xf32>, vector<4x512xf32>, vector<12x512xf32>, vector<1x512xf32>, vector<3x512xf32> -> vector<32x512xf32>
    %c0_45 = arith.constant 0 : index
    %c0_46 = arith.constant 0 : index
    %119 = vector.load %arg3[%c0_45, %c0_46] : memref<32x32xf32, #tpu.memory_space<vmem>>, vector<32x32xf32>
    %cst_47 = arith.constant dense<0.000000e+00> : vector<32x512xf32>
    %120 = tpu.matmul %119, %118, %cst_47 {dimension_numbers = #tpu.dot_dimension_numbers<[1], [0], [0], [1], [0, 0, 1, 1], [], []>} : vector<32x32xf32>, vector<32x512xf32>, vector<32x512xf32> -> vector<32x512xf32>
    %121 = vector.extract_strided_slice %120 {offsets = [0, 0], sizes = [12, 512], strides = [1, 1]} : vector<32x512xf32> to vector<12x512xf32>
    %122 = vector.extract_strided_slice %120 {offsets = [16, 0], sizes = [12, 512], strides = [1, 1]} : vector<32x512xf32> to vector<12x512xf32>
    %c2_48 = arith.constant 2 : index
    %c0_49 = arith.constant 0 : index
    %c0_50 = arith.constant 0 : index
    %123 = vector.load %arg5[%c2_48, %c0_49, %c0_50] : memref<5x12x1xf32, #tpu.memory_space<vmem>>, vector<1x12x1xf32>
    %124 = vector.shape_cast %123 : vector<1x12x1xf32> to vector<12x1xf32>
    %c9 = arith.constant 9 : index
    %c0_51 = arith.constant 0 : index
    %c0_52 = arith.constant 0 : index
    %125 = vector.load %arg4[%c9, %c0_51, %c0_52] : memref<18x12x1xf32, #tpu.memory_space<vmem>>, vector<1x12x1xf32>
    %126 = vector.shape_cast %125 : vector<1x12x1xf32> to vector<12x1xf32>
    %c10 = arith.constant 10 : index
    %c0_53 = arith.constant 0 : index
    %c0_54 = arith.constant 0 : index
    %127 = vector.load %arg4[%c10, %c0_53, %c0_54] : memref<18x12x1xf32, #tpu.memory_space<vmem>>, vector<1x12x1xf32>
    %128 = vector.shape_cast %127 : vector<1x12x1xf32> to vector<12x1xf32>
    %c11 = arith.constant 11 : index
    %c0_55 = arith.constant 0 : index
    %c0_56 = arith.constant 0 : index
    %129 = vector.load %arg4[%c11, %c0_55, %c0_56] : memref<18x12x1xf32, #tpu.memory_space<vmem>>, vector<1x12x1xf32>
    %130 = vector.shape_cast %129 : vector<1x12x1xf32> to vector<12x1xf32>
    %c12 = arith.constant 12 : index
    %c0_57 = arith.constant 0 : index
    %c0_58 = arith.constant 0 : index
    %131 = vector.load %arg4[%c12, %c0_57, %c0_58] : memref<18x12x1xf32, #tpu.memory_space<vmem>>, vector<1x12x1xf32>
    %132 = vector.shape_cast %131 : vector<1x12x1xf32> to vector<12x1xf32>
    %c13 = arith.constant 13 : index
    %c0_59 = arith.constant 0 : index
    %c0_60 = arith.constant 0 : index
    %133 = vector.load %arg4[%c13, %c0_59, %c0_60] : memref<18x12x1xf32, #tpu.memory_space<vmem>>, vector<1x12x1xf32>
    %134 = vector.shape_cast %133 : vector<1x12x1xf32> to vector<12x1xf32>
    %c14 = arith.constant 14 : index
    %c0_61 = arith.constant 0 : index
    %c0_62 = arith.constant 0 : index
    %135 = vector.load %arg4[%c14, %c0_61, %c0_62] : memref<18x12x1xf32, #tpu.memory_space<vmem>>, vector<1x12x1xf32>
    %136 = vector.shape_cast %135 : vector<1x12x1xf32> to vector<12x1xf32>
    %c15 = arith.constant 15 : index
    %c0_63 = arith.constant 0 : index
    %c0_64 = arith.constant 0 : index
    %137 = vector.load %arg4[%c15, %c0_63, %c0_64] : memref<18x12x1xf32, #tpu.memory_space<vmem>>, vector<1x12x1xf32>
    %138 = vector.shape_cast %137 : vector<1x12x1xf32> to vector<12x1xf32>
    %c16 = arith.constant 16 : index
    %c0_65 = arith.constant 0 : index
    %c0_66 = arith.constant 0 : index
    %139 = vector.load %arg4[%c16, %c0_65, %c0_66] : memref<18x12x1xf32, #tpu.memory_space<vmem>>, vector<1x12x1xf32>
    %140 = vector.shape_cast %139 : vector<1x12x1xf32> to vector<12x1xf32>
    %c17 = arith.constant 17 : index
    %c0_67 = arith.constant 0 : index
    %c0_68 = arith.constant 0 : index
    %141 = vector.load %arg4[%c17, %c0_67, %c0_68] : memref<18x12x1xf32, #tpu.memory_space<vmem>>, vector<1x12x1xf32>
    %142 = vector.shape_cast %141 : vector<1x12x1xf32> to vector<12x1xf32>
    %c17_i32_69 = arith.constant 17 : i32
    %143 = tpu.dynamic_rotate %122 by %c17_i32_69 dim 1 : vector<12x512xf32>, i32 -> vector<12x512xf32>
    %cst_70 = arith.constant 0.000000e+00 : f32
    %144 = vector.shape_cast %15 : vector<1x512xi1> to vector<1x512xi1>
    %145 = vector.broadcast %144 : vector<1x512xi1> to vector<12x512xi1>
    %146 = vector.broadcast %cst_70 : f32 to vector<12x512xf32>
    %147 = arith.select %145, %143, %146 : vector<12x512xi1>, vector<12x512xf32>
    %148 = vector.broadcast %126 : vector<12x1xf32> to vector<12x512xf32>
    %149 = arith.mulf %147, %148 : vector<12x512xf32>
    %c16_i32_71 = arith.constant 16 : i32
    %150 = tpu.dynamic_rotate %122 by %c16_i32_71 dim 1 : vector<12x512xf32>, i32 -> vector<12x512xf32>
    %cst_72 = arith.constant 0.000000e+00 : f32
    %151 = vector.shape_cast %8 : vector<1x512xi1> to vector<1x512xi1>
    %152 = vector.broadcast %151 : vector<1x512xi1> to vector<12x512xi1>
    %153 = vector.broadcast %cst_72 : f32 to vector<12x512xf32>
    %154 = arith.select %152, %150, %153 : vector<12x512xi1>, vector<12x512xf32>
    %155 = vector.broadcast %128 : vector<12x1xf32> to vector<12x512xf32>
    %156 = arith.mulf %154, %155 : vector<12x512xf32>
    %157 = arith.addf %149, %156 : vector<12x512xf32>
    %c15_i32_73 = arith.constant 15 : i32
    %158 = tpu.dynamic_rotate %122 by %c15_i32_73 dim 1 : vector<12x512xf32>, i32 -> vector<12x512xf32>
    %cst_74 = arith.constant 0.000000e+00 : f32
    %159 = vector.shape_cast %16 : vector<1x512xi1> to vector<1x512xi1>
    %160 = vector.broadcast %159 : vector<1x512xi1> to vector<12x512xi1>
    %161 = vector.broadcast %cst_74 : f32 to vector<12x512xf32>
    %162 = arith.select %160, %158, %161 : vector<12x512xi1>, vector<12x512xf32>
    %163 = vector.broadcast %130 : vector<12x1xf32> to vector<12x512xf32>
    %164 = arith.mulf %162, %163 : vector<12x512xf32>
    %165 = arith.addf %157, %164 : vector<12x512xf32>
    %c1_i32_75 = arith.constant 1 : i32
    %166 = tpu.dynamic_rotate %122 by %c1_i32_75 dim 1 : vector<12x512xf32>, i32 -> vector<12x512xf32>
    %cst_76 = arith.constant 0.000000e+00 : f32
    %167 = vector.shape_cast %12 : vector<1x512xi1> to vector<1x512xi1>
    %168 = vector.broadcast %167 : vector<1x512xi1> to vector<12x512xi1>
    %169 = vector.broadcast %cst_76 : f32 to vector<12x512xf32>
    %170 = arith.select %168, %166, %169 : vector<12x512xi1>, vector<12x512xf32>
    %171 = vector.broadcast %132 : vector<12x1xf32> to vector<12x512xf32>
    %172 = arith.mulf %170, %171 : vector<12x512xf32>
    %173 = arith.addf %165, %172 : vector<12x512xf32>
    %174 = vector.broadcast %134 : vector<12x1xf32> to vector<12x512xf32>
    %175 = arith.mulf %122, %174 : vector<12x512xf32>
    %176 = arith.addf %173, %175 : vector<12x512xf32>
    %c511_i32_77 = arith.constant 511 : i32
    %177 = tpu.dynamic_rotate %122 by %c511_i32_77 dim 1 : vector<12x512xf32>, i32 -> vector<12x512xf32>
    %cst_78 = arith.constant 0.000000e+00 : f32
    %178 = vector.shape_cast %14 : vector<1x512xi1> to vector<1x512xi1>
    %179 = vector.broadcast %178 : vector<1x512xi1> to vector<12x512xi1>
    %180 = vector.broadcast %cst_78 : f32 to vector<12x512xf32>
    %181 = arith.select %179, %177, %180 : vector<12x512xi1>, vector<12x512xf32>
    %182 = vector.broadcast %136 : vector<12x1xf32> to vector<12x512xf32>
    %183 = arith.mulf %181, %182 : vector<12x512xf32>
    %184 = arith.addf %176, %183 : vector<12x512xf32>
    %c497_i32_79 = arith.constant 497 : i32
    %185 = tpu.dynamic_rotate %122 by %c497_i32_79 dim 1 : vector<12x512xf32>, i32 -> vector<12x512xf32>
    %cst_80 = arith.constant 0.000000e+00 : f32
    %186 = vector.shape_cast %17 : vector<1x512xi1> to vector<1x512xi1>
    %187 = vector.broadcast %186 : vector<1x512xi1> to vector<12x512xi1>
    %188 = vector.broadcast %cst_80 : f32 to vector<12x512xf32>
    %189 = arith.select %187, %185, %188 : vector<12x512xi1>, vector<12x512xf32>
    %190 = vector.broadcast %138 : vector<12x1xf32> to vector<12x512xf32>
    %191 = arith.mulf %189, %190 : vector<12x512xf32>
    %192 = arith.addf %184, %191 : vector<12x512xf32>
    %c496_i32_81 = arith.constant 496 : i32
    %193 = tpu.dynamic_rotate %122 by %c496_i32_81 dim 1 : vector<12x512xf32>, i32 -> vector<12x512xf32>
    %cst_82 = arith.constant 0.000000e+00 : f32
    %194 = vector.shape_cast %10 : vector<1x512xi1> to vector<1x512xi1>
    %195 = vector.broadcast %194 : vector<1x512xi1> to vector<12x512xi1>
    %196 = vector.broadcast %cst_82 : f32 to vector<12x512xf32>
    %197 = arith.select %195, %193, %196 : vector<12x512xi1>, vector<12x512xf32>
    %198 = vector.broadcast %140 : vector<12x1xf32> to vector<12x512xf32>
    %199 = arith.mulf %197, %198 : vector<12x512xf32>
    %200 = arith.addf %192, %199 : vector<12x512xf32>
    %c495_i32_83 = arith.constant 495 : i32
    %201 = tpu.dynamic_rotate %122 by %c495_i32_83 dim 1 : vector<12x512xf32>, i32 -> vector<12x512xf32>
    %cst_84 = arith.constant 0.000000e+00 : f32
    %202 = vector.shape_cast %18 : vector<1x512xi1> to vector<1x512xi1>
    %203 = vector.broadcast %202 : vector<1x512xi1> to vector<12x512xi1>
    %204 = vector.broadcast %cst_84 : f32 to vector<12x512xf32>
    %205 = arith.select %203, %201, %204 : vector<12x512xi1>, vector<12x512xf32>
    %206 = vector.broadcast %142 : vector<12x1xf32> to vector<12x512xf32>
    %207 = arith.mulf %205, %206 : vector<12x512xf32>
    %208 = arith.addf %200, %207 : vector<12x512xf32>
    %209 = vector.broadcast %124 : vector<12x1xf32> to vector<12x512xf32>
    %210 = arith.addf %208, %209 : vector<12x512xf32>
    %c1_85 = arith.constant 1 : index
    %c0_86 = arith.constant 0 : index
    %c0_87 = arith.constant 0 : index
    %211 = vector.load %arg2[%c1_85, %c0_86, %c0_87] : memref<3x12x12xf32, #tpu.memory_space<vmem>>, vector<1x12x12xf32>
    %212 = vector.shape_cast %211 : vector<1x12x12xf32> to vector<12x12xf32>
    %cst_88 = arith.constant dense<0.000000e+00> : vector<12x512xf32>
    %213 = tpu.matmul %212, %210, %cst_88 {dimension_numbers = #tpu.dot_dimension_numbers<[1], [0], [0], [1], [0, 0, 1, 1], [], []>} : vector<12x12xf32>, vector<12x512xf32>, vector<12x512xf32> -> vector<12x512xf32>
    %c3_89 = arith.constant 3 : index
    %c0_90 = arith.constant 0 : index
    %c0_91 = arith.constant 0 : index
    %214 = vector.load %arg5[%c3_89, %c0_90, %c0_91] : memref<5x12x1xf32, #tpu.memory_space<vmem>>, vector<1x12x1xf32>
    %215 = vector.shape_cast %214 : vector<1x12x1xf32> to vector<12x1xf32>
    %216 = vector.broadcast %215 : vector<12x1xf32> to vector<12x512xf32>
    %217 = arith.addf %213, %216 : vector<12x512xf32>
    %cst_92 = arith.constant dense<0xFF800000> : vector<512xf32>
    %218 = vector.multi_reduction <maximumf>, %217, %cst_92 [0] : vector<12x512xf32> to vector<512xf32>
    %219 = vector.shape_cast %218 : vector<512xf32> to vector<1x512xf32>
    %220 = vector.broadcast %219 : vector<1x512xf32> to vector<12x512xf32>
    %221 = arith.subf %217, %220 : vector<12x512xf32>
    %222 = math.exp %221 : vector<12x512xf32>
    %cst_93 = arith.constant dense<0.000000e+00> : vector<512xf32>
    %223 = vector.multi_reduction <add>, %222, %cst_93 [0] : vector<12x512xf32> to vector<512xf32>
    %224 = vector.shape_cast %223 : vector<512xf32> to vector<1x512xf32>
    %225 = tpu.reciprocal %224 {approx = true} : vector<1x512xf32> -> vector<1x512xf32>
    %226 = vector.broadcast %225 : vector<1x512xf32> to vector<12x512xf32>
    %227 = arith.mulf %222, %226 : vector<12x512xf32>
    %228 = vector.extract_strided_slice %217 {offsets = [0, 0], sizes = [12, 256], strides = [1, 1]} : vector<12x512xf32> to vector<12x256xf32>
    %cst_94 = arith.constant dense<0xFF800000> : vector<12xf32>
    %229 = vector.multi_reduction <maximumf>, %228, %cst_94 [1] : vector<12x256xf32> to vector<12xf32>
    %230 = vector.shape_cast %229 : vector<12xf32> to vector<12x1xf32>
    %231 = vector.broadcast %230 : vector<12x1xf32> to vector<12x256xf32>
    %232 = arith.subf %228, %231 : vector<12x256xf32>
    %233 = math.exp %232 : vector<12x256xf32>
    %cst_95 = arith.constant dense<0.000000e+00> : vector<12xf32>
    %234 = vector.multi_reduction <add>, %233, %cst_95 [1] : vector<12x256xf32> to vector<12xf32>
    %235 = vector.shape_cast %234 : vector<12xf32> to vector<12x1xf32>
    %236 = tpu.reciprocal %235 {approx = true} : vector<12x1xf32> -> vector<12x1xf32>
    %237 = vector.broadcast %236 : vector<12x1xf32> to vector<12x256xf32>
    %238 = arith.mulf %233, %237 : vector<12x256xf32>
    %239 = vector.extract_strided_slice %217 {offsets = [0, 256], sizes = [12, 256], strides = [1, 1]} : vector<12x512xf32> to vector<12x256xf32>
    %cst_96 = arith.constant dense<0xFF800000> : vector<12xf32>
    %240 = vector.multi_reduction <maximumf>, %239, %cst_96 [1] : vector<12x256xf32> to vector<12xf32>
    %241 = vector.shape_cast %240 : vector<12xf32> to vector<12x1xf32>
    %242 = vector.broadcast %241 : vector<12x1xf32> to vector<12x256xf32>
    %243 = arith.subf %239, %242 : vector<12x256xf32>
    %244 = math.exp %243 : vector<12x256xf32>
    %cst_97 = arith.constant dense<0.000000e+00> : vector<12xf32>
    %245 = vector.multi_reduction <add>, %244, %cst_97 [1] : vector<12x256xf32> to vector<12xf32>
    %246 = vector.shape_cast %245 : vector<12xf32> to vector<12x1xf32>
    %247 = tpu.reciprocal %246 {approx = true} : vector<12x1xf32> -> vector<12x1xf32>
    %248 = vector.broadcast %247 : vector<12x1xf32> to vector<12x256xf32>
    %249 = arith.mulf %244, %248 : vector<12x256xf32>
    %250 = tpu.concatenate %238, %249 in 1 : vector<12x256xf32>, vector<12x256xf32> -> vector<12x512xf32>
    %251 = arith.addf %227, %250 : vector<12x512xf32>
    %252 = arith.mulf %121, %251 : vector<12x512xf32>
    %c2_98 = arith.constant 2 : index
    %c0_99 = arith.constant 0 : index
    %c0_100 = arith.constant 0 : index
    %253 = vector.load %arg2[%c2_98, %c0_99, %c0_100] : memref<3x12x12xf32, #tpu.memory_space<vmem>>, vector<1x12x12xf32>
    %254 = vector.shape_cast %253 : vector<1x12x12xf32> to vector<12x12xf32>
    %cst_101 = arith.constant dense<0.000000e+00> : vector<12x512xf32>
    %255 = tpu.matmul %254, %252, %cst_101 {dimension_numbers = #tpu.dot_dimension_numbers<[1], [0], [0], [1], [0, 0, 1, 1], [], []>} : vector<12x12xf32>, vector<12x512xf32>, vector<12x512xf32> -> vector<12x512xf32>
    %c4_102 = arith.constant 4 : index
    %c0_103 = arith.constant 0 : index
    %c0_104 = arith.constant 0 : index
    %256 = vector.load %arg5[%c4_102, %c0_103, %c0_104] : memref<5x12x1xf32, #tpu.memory_space<vmem>>, vector<1x12x1xf32>
    %257 = vector.shape_cast %256 : vector<1x12x1xf32> to vector<12x1xf32>
    %258 = vector.broadcast %257 : vector<12x1xf32> to vector<12x512xf32>
    %259 = arith.addf %255, %258 : vector<12x512xf32>
    %c0_105 = arith.constant 0 : index
    %c0_106 = arith.constant 0 : index
    %260 = vector.load %arg6[%c0_105, %c0_106] : memref<12x512xf32, #tpu.memory_space<vmem>>, vector<12x512xf32>
    tpu.vector_store %arg6[%c0_105, %c0_106], %259 {strides = array<i32>} : memref<12x512xf32, #tpu.memory_space<vmem>>, vector<12x512xf32>,
    return
  }
  func.func @transform_0(%arg0: i32) -> (i32, i32) {
    %c0_i32 = arith.constant 0 : i32
    %c0_i32_0 = arith.constant 0 : i32
    return %c0_i32, %arg0 : i32, i32
  }
  func.func @transform_1(%arg0: i32) -> (i32, i32, i32) {
    %c0_i32 = arith.constant 0 : i32
    %c0_i32_0 = arith.constant 0 : i32
    %c0_i32_1 = arith.constant 0 : i32
    %c0_i32_2 = arith.constant 0 : i32
    return %c0_i32, %c0_i32_0, %c0_i32_1 : i32, i32, i32
  }
  func.func @transform_2(%arg0: i32) -> (i32, i32) {
    %c0_i32 = arith.constant 0 : i32
    %c0_i32_0 = arith.constant 0 : i32
    %c0_i32_1 = arith.constant 0 : i32
    return %c0_i32, %c0_i32_0 : i32, i32
  }
  func.func @transform_3(%arg0: i32) -> (i32, i32, i32) {
    %c0_i32 = arith.constant 0 : i32
    %c0_i32_0 = arith.constant 0 : i32
    %c0_i32_1 = arith.constant 0 : i32
    %c0_i32_2 = arith.constant 0 : i32
    return %c0_i32, %c0_i32_0, %c0_i32_1 : i32, i32, i32
  }
  func.func @transform_4(%arg0: i32) -> (i32, i32, i32) {
    %c0_i32 = arith.constant 0 : i32
    %c0_i32_0 = arith.constant 0 : i32
    %c0_i32_1 = arith.constant 0 : i32
    %c0_i32_2 = arith.constant 0 : i32
    return %c0_i32, %c0_i32_0, %c0_i32_1 : i32, i32, i32
  }
  func.func @transform_5(%arg0: i32) -> (i32, i32) {
    %c0_i32 = arith.constant 0 : i32
    %c0_i32_0 = arith.constant 0 : i32
    return %c0_i32, %arg0 : i32, i32
  }
}

</mosaic_0001>

<llo_original>
// kernel: tpu_custom_call.1
$region0: #{tpu_custom_call.1}
  #allocation0 [shape = 'u32[]', space=smem, size = 0x4, offset = 0x4, fixed_abs, tag = 'smem constant byte address 0x4 - core index']
  #allocation1 [shape = 'u32[144,128]{1,0:T(1,128)}', space=vmem, size = 0x12000, scoped, tag = 'internal scratch']
  %s0 = inlined_call_operand.vmem [shape: f32[12,512], index: 0, kind: input, shape index: {}]
  %s1 = inlined_call_operand.vmem [shape: f32[3,12,12], index: 1, kind: input, shape index: {}]
  %s2 = inlined_call_operand.vmem [shape: f32[32,32], index: 2, kind: input, shape index: {}]
  %s3 = inlined_call_operand.vmem [shape: f32[18,12,1], index: 3, kind: input, shape index: {}]
  %s4 = inlined_call_operand.vmem [shape: f32[5,12,1], index: 4, kind: input, shape index: {}]
  %s5 = inlined_call_operand.hbm [shape: f32[12,512], index: 5, kind: output, shape index: {}]
  %s6 = sld [smem:[#allocation0]]
  $region30: #{tpu_custom_call.1} parent=0
    _
  %s8 = ssub.s32 1, %s6
  %s9 = scalar_select 0, %s8, %s6
  $region1: #{tpu_custom_call.1} parent=0
    #allocation2 [shape = 'u8[32768]{0}', space=vmem, size = 0x8000, scoped, tag = 'output window, operand 0, single buffered']
    #allocation3 [shape = 's32[1]{0}', space=sflag, size = 0x4, scoped, tag = 'scoped memory for tpu_custom_call.1']
    %10 = vsyncpa [#allocation3], 0
    // Predicated region
    $region2: #{tpu_custom_call.1} parent=1 // pred_check
      _
    $region3: #{tpu_custom_call.1} parent=1 // pred_check_branch
      %12 = sbr.rel (0) target = $region5
    $region4: #{tpu_custom_call.1} parent=1 // pred_region
      _
    $region5: #{tpu_custom_call.1} parent=1 // pred_fallthru
      _
    // Predicated region
    $region6: #{tpu_custom_call.1} parent=1 // pred_check
      _
    $region7: #{tpu_custom_call.1} parent=1 // pred_check_branch
      %14 = sbr.rel (0) target = $region9
    $region8: #{tpu_custom_call.1} parent=1 // pred_region
      _
    $region9: #{tpu_custom_call.1} parent=1 // pred_fallthru
      _
    // Predicated region
    $region10: #{tpu_custom_call.1} parent=1 // pred_check
      _
    $region11: #{tpu_custom_call.1} parent=1 // pred_check_branch
      %16 = sbr.rel (0) target = $region13
    $region12: #{tpu_custom_call.1} parent=1 // pred_region
      _
    $region13: #{tpu_custom_call.1} parent=1 // pred_fallthru
      _
    // Predicated region
    $region14: #{tpu_custom_call.1} parent=1 // pred_check
      _
    $region15: #{tpu_custom_call.1} parent=1 // pred_check_branch
      %18 = sbr.rel (0) target = $region17
    $region16: #{tpu_custom_call.1} parent=1 // pred_region
      _
    $region17: #{tpu_custom_call.1} parent=1 // pred_fallthru
      _
    // Predicated region
    $region18: #{tpu_custom_call.1} parent=1 // pred_check
      _
    $region19: #{tpu_custom_call.1} parent=1 // pred_check_branch
      %20 = sbr.rel (0) target = $region21
    $region20: #{tpu_custom_call.1} parent=1 // pred_region
      _
    $region21: #{tpu_custom_call.1} parent=1 // pred_fallthru
      _
    %v21 = vlaneseq
    %v22 = vand.u32 %v21, 127
    %v23 = vadd.s32 %v22, 128
    %v24 = vadd.s32 %v22, 256
    %v25 = vadd.s32 %v22, 384
    %v26 = vand.u32 %v22, 15
    %v27 = vand.u32 %v23, 15
    %v28 = vand.u32 %v24, 15
    %v29 = vand.u32 %v25, 15
    %v30 = vshra.s32 %v22, 4
    %v31 = vshra.s32 %v23, 4
    %v32 = vshra.s32 %v24, 4
    %v33 = vshra.s32 %v25, 4
    %v34 = vand.u32 %v30, 15
    %v35 = vand.u32 %v31, 15
    %v36 = vand.u32 %v32, 15
    %v37 = vand.u32 %v33, 15
    %vm38 = vcmp.ge.s32.totalorder %v34, 1
    %vm39 = vcmp.ge.s32.totalorder %v35, 1
    %vm40 = vcmp.ge.s32.totalorder %v36, 1
    %vm41 = vcmp.ge.s32.totalorder %v37, 1
    %vm42 = vcmp.le.s32.totalorder %v34, 14
    %vm43 = vcmp.le.s32.totalorder %v35, 14
    %vm44 = vcmp.le.s32.totalorder %v36, 14
    %vm45 = vcmp.le.s32.totalorder %v37, 14
    %vm46 = vcmp.ge.s32.totalorder %v26, 1
    %vm47 = vcmp.ge.s32.totalorder %v27, 1
    %vm48 = vcmp.ge.s32.totalorder %v28, 1
    %vm49 = vcmp.ge.s32.totalorder %v29, 1
    %vm50 = vcmp.le.s32.totalorder %v26, 14
    %vm51 = vcmp.le.s32.totalorder %v27, 14
    %vm52 = vcmp.le.s32.totalorder %v28, 14
    %vm53 = vcmp.le.s32.totalorder %v29, 14
    %vm54 = vmand %vm38, %vm46
    %vm55 = vmand %vm39, %vm47
    %vm56 = vmand %vm40, %vm48
    %vm57 = vmand %vm41, %vm49
    %vm58 = vmand %vm38, %vm50
    %vm59 = vmand %vm39, %vm51
    %vm60 = vmand %vm40, %vm52
    %vm61 = vmand %vm41, %vm53
    %vm62 = vmand %vm42, %vm46
    %vm63 = vmand %vm43, %vm47
    %vm64 = vmand %vm44, %vm48
    %vm65 = vmand %vm45, %vm49
    %vm66 = vmand %vm42, %vm50
    %vm67 = vmand %vm43, %vm51
    %vm68 = vmand %vm44, %vm52
    %vm69 = vmand %vm45, %vm53
    %v70 = vld [vmem:[%s0] sm:$0xff]
    %v71 = vld [vmem:[%s0 + $0x8] sm:$0xff]
    %v72 = vld [vmem:[%s0 + $0x10] sm:$0xff]
    %v73 = vld [vmem:[%s0 + $0x18] sm:$0xff]
    %v74 = vld [vmem:[%s0 + $0x20] sm:$0xf]
    %v75 = vld [vmem:[%s0 + $0x28] sm:$0xf]
    %v76 = vld [vmem:[%s0 + $0x30] sm:$0xf]
    %v77 = vld [vmem:[%s0 + $0x38] sm:$0xf]
    %v78 = vld [vmem:[%s1] sm:$0xff]
    %v79 = vld [vmem:[%s1 + $0x8] sm:$0xf]
    %v80 = vld [vmem:[%s4] sm:$0xff]
    %v81 = vld [vmem:[%s4 + $0x8] sm:$0xf]
    %83 = vset.pattern.permute.xlu0 0
    %84 = vperm.xlu0 %83, %v80
    %v85 = vpop.permute.xlu0 %84
    %88 = vset.pattern.permute.xlu0 0
    %89 = vperm.xlu0 %88, %v81
    %v90 = vpop.permute.xlu0 %89
    %vm92 = vcmask 97280
    %v94 = vsel %vm92, %v78, 0
    %v97 = vsel %vm92, %v79, 0
    %vm99 = vcmask 1043456
    %v101 = vsel %vm99, %v74, 0
    %v104 = vsel %vm99, %v75, 0
    %v107 = vsel %vm99, %v76, 0
    %v110 = vsel %vm99, %v77, 0
    %112 = vmatprep.subr.mxu0 %v71
    %113 = vmatpush1.msra.mxu0 %v70
    %114 = vmatprep.subr.mxu0 %v104
    %115 = vmatpush1.msra.mxu0 %v101
    %116 = vmatprep.subr.mxu0 0.0
    %117 = vmatpush1.msra.mxu0 0.0
    %118 = vmatprep.subr.mxu0 0.0
    %119 = vmatpush1.msra.mxu0 0.0
    %120 = vmatprep.subr.mxu0 0.0
    %121 = vmatpush1.msra.mxu0 0.0
    %122 = vmatprep.subr.mxu0 0.0
    %123 = vmatpush1.msra.mxu0 0.0
    %124 = vmatprep.subr.mxu0 0.0
    %125 = vmatpush1.msra.mxu0 0.0
    %126 = vmatprep.subr.mxu0 0.0
    %127 = vmatpush1.msra.mxu0 0.0
    %128 = vmatprep.subr.mxu0 0.0
    %129 = vmatpush1.msra.mxu0 0.0
    %130 = vmatprep.subr.mxu0 0.0
    %131 = vmatpush1.msra.mxu0 0.0
    %132 = vmatprep.subr.mxu0 0.0
    %133 = vmatpush1.msra.mxu0 0.0
    %134 = vmatprep.subr.mxu0 0.0
    %135 = vmatpush1.msra.mxu0 0.0
    %136 = vmatprep.subr.mxu0 0.0
    %137 = vmatpush1.msra.mxu0 0.0
    %138 = vmatprep.subr.mxu0 0.0
    %139 = vmatpush1.msra.mxu0 0.0
    %140 = vmatprep.subr.mxu0 0.0
    %141 = vmatpush1.msra.mxu0 0.0
    %142 = vmatprep.subr.mxu0 0.0
    %143 = vmatpush1.msra.mxu0 0.0
    %144 = vmatprep.subr.mxu0 0.0
    %145 = vmatpush1.msra.mxu0 0.0
    %146 = vmatprep.subr.mxu0 0.0
    %147 = vmatpush1.msra.mxu0 0.0
    %148 = vmatprep.subr.mxu0 0.0
    %149 = vmatpush1.msra.mxu0 0.0
    %150 = vmatprep.subr.mxu0 0.0
    %151 = vmatpush1.msra.mxu0 0.0
    %152 = vmatprep.subr.mxu0 0.0
    %153 = vmatpush1.msra.mxu0 0.0
    %154 = vmatprep.subr.mxu0 0.0
    %155 = vmatpush1.msra.mxu0 0.0
    %156 = vmatprep.subr.mxu0 0.0
    %157 = vmatpush1.msra.mxu0 0.0
    %158 = vmatprep.subr.mxu0 0.0
    %159 = vmatpush1.msra.mxu0 0.0
    %160 = vmatprep.subr.mxu0 0.0
    %161 = vmatpush1.msra.mxu0 0.0
    %162 = vmatprep.subr.mxu0 0.0
    %163 = vmatpush1.msra.mxu0 0.0
    %164 = vmatprep.subr.mxu0 0.0
    %165 = vmatpush1.msra.mxu0 0.0
    %166 = vmatprep.subr.mxu0 0.0
    %167 = vmatpush1.msra.mxu0 0.0
    %168 = vmatprep.subr.mxu0 0.0
    %169 = vmatpush1.msra.mxu0 0.0
    %170 = vmatprep.subr.mxu0 0.0
    %171 = vmatpush1.msra.mxu0 0.0
    %172 = vmatprep.subr.mxu0 0.0
    %173 = vmatpush1.msra.mxu0 0.0
    %174 = vmatprep.subr.mxu0 0.0
    %175 = vmatpush1.msra.mxu0 0.0
    %176 = vmatprep.mubr.f32.mxu0 0.0
    %177 = vmatmul.mubr.f32.gmra.mrb[0].mxu0 %v94
    %v178 = vpop.f32.mrb[0].mxu0
    %v179 = vadd.f32 %v85, %v178
    %v180 = vpop.f32.mrb[0].mxu0
    %v181 = vadd.f32 %v85, %v180
    %182 = vmatprep.mubr.f32.mxu0 0.0
    %183 = vmatmul.mubr.f32.gmra.mrb[0].mxu0 %v97
    %v184 = vpop.f32.mrb[0].mxu0
    %v185 = vadd.f32 %v90, %v184
    %v186 = vpop.f32.mrb[0].mxu0
    %v187 = vadd.f32 %v90, %v186
    %188 = vdwg.mxu0
    %189 = vmatprep.subr.mxu0 %v73
    %190 = vmatpush1.msra.mxu0 %v72
    %191 = vmatprep.subr.mxu0 %v110
    %192 = vmatpush1.msra.mxu0 %v107
    %193 = vmatprep.subr.mxu0 0.0
    %194 = vmatpush1.msra.mxu0 0.0
    %195 = vmatprep.subr.mxu0 0.0
    %196 = vmatpush1.msra.mxu0 0.0
    %197 = vmatprep.subr.mxu0 0.0
    %198 = vmatpush1.msra.mxu0 0.0
    %199 = vmatprep.subr.mxu0 0.0
    %200 = vmatpush1.msra.mxu0 0.0
    %201 = vmatprep.subr.mxu0 0.0
    %202 = vmatpush1.msra.mxu0 0.0
    %203 = vmatprep.subr.mxu0 0.0
    %204 = vmatpush1.msra.mxu0 0.0
    %205 = vmatprep.subr.mxu0 0.0
    %206 = vmatpush1.msra.mxu0 0.0
    %207 = vmatprep.subr.mxu0 0.0
    %208 = vmatpush1.msra.mxu0 0.0
    %209 = vmatprep.subr.mxu0 0.0
    %210 = vmatpush1.msra.mxu0 0.0
    %211 = vmatprep.subr.mxu0 0.0
    %212 = vmatpush1.msra.mxu0 0.0
    %213 = vmatprep.subr.mxu0 0.0
    %214 = vmatpush1.msra.mxu0 0.0
    %215 = vmatprep.subr.mxu0 0.0
    %216 = vmatpush1.msra.mxu0 0.0
    %217 = vmatprep.subr.mxu0 0.0
    %218 = vmatpush1.msra.mxu0 0.0
    %219 = vmatprep.subr.mxu0 0.0
    %220 = vmatpush1.msra.mxu0 0.0
    %221 = vmatprep.subr.mxu0 0.0
    %222 = vmatpush1.msra.mxu0 0.0
    %223 = vmatprep.subr.mxu0 0.0
    %224 = vmatpush1.msra.mxu0 0.0
    %225 = vmatprep.subr.mxu0 0.0
    %226 = vmatpush1.msra.mxu0 0.0
    %227 = vmatprep.subr.mxu0 0.0
    %228 = vmatpush1.msra.mxu0 0.0
    %229 = vmatprep.subr.mxu0 0.0
    %230 = vmatpush1.msra.mxu0 0.0
    %231 = vmatprep.subr.mxu0 0.0
    %232 = vmatpush1.msra.mxu0 0.0
    %233 = vmatprep.subr.mxu0 0.0
    %234 = vmatpush1.msra.mxu0 0.0
    %235 = vmatprep.subr.mxu0 0.0
    %236 = vmatpush1.msra.mxu0 0.0
    %237 = vmatprep.subr.mxu0 0.0
    %238 = vmatpush1.msra.mxu0 0.0
    %239 = vmatprep.subr.mxu0 0.0
    %240 = vmatpush1.msra.mxu0 0.0
    %241 = vmatprep.subr.mxu0 0.0
    %242 = vmatpush1.msra.mxu0 0.0
    %243 = vmatprep.subr.mxu0 0.0
    %244 = vmatpush1.msra.mxu0 0.0
    %245 = vmatprep.subr.mxu0 0.0
    %246 = vmatpush1.msra.mxu0 0.0
    %247 = vmatprep.subr.mxu0 0.0
    %248 = vmatpush1.msra.mxu0 0.0
    %249 = vmatprep.subr.mxu0 0.0
    %250 = vmatpush1.msra.mxu0 0.0
    %251 = vmatprep.subr.mxu0 0.0
    %252 = vmatpush1.msra.mxu0 0.0
    %253 = vmatprep.mubr.f32.mxu0 0.0
    %254 = vmatmul.mubr.f32.gmra.mrb[0].mxu0 %v94
    %v255 = vpop.f32.mrb[0].mxu0
    %v256 = vadd.f32 %v85, %v255
    %v257 = vpop.f32.mrb[0].mxu0
    %v258 = vadd.f32 %v85, %v257
    %259 = vmatprep.mubr.f32.mxu0 0.0
    %260 = vmatmul.mubr.f32.gmra.mrb[0].mxu0 %v97
    %v261 = vpop.f32.mrb[0].mxu0
    %v262 = vadd.f32 %v90, %v261
    %v263 = vpop.f32.mrb[0].mxu0
    %v264 = vadd.f32 %v90, %v263
    %265 = vdwg.mxu0
    %s266 = scalar_lea.vmem %s4, 16
    %v267 = vld [vmem:[%s266] sm:$0xff]
    %v268 = vld [vmem:[%s266 + $0x8] sm:$0xf]
    %v269 = vld [vmem:[%s3] sm:$0xff]
    %v270 = vld [vmem:[%s3 + $0x8] sm:$0xf]
    %s271 = scalar_lea.vmem %s3, 16
    %v272 = vld [vmem:[%s271] sm:$0xff]
    %v273 = vld [vmem:[%s271 + $0x8] sm:$0xf]
    %s274 = scalar_lea.vmem %s3, 32
    %v275 = vld [vmem:[%s274] sm:$0xff]
    %v276 = vld [vmem:[%s274 + $0x8] sm:$0xf]
    %s277 = scalar_lea.vmem %s3, 48
    %v278 = vld [vmem:[%s277] sm:$0xff]
    %v279 = vld [vmem:[%s277 + $0x8] sm:$0xf]
    %s280 = scalar_lea.vmem %s3, 64
    %v281 = vld [vmem:[%s280] sm:$0xff]
    %v282 = vld [vmem:[%s280 + $0x8] sm:$0xf]
    %s283 = scalar_lea.vmem %s3, 80
    %v284 = vld [vmem:[%s283] sm:$0xff]
    %v285 = vld [vmem:[%s283 + $0x8] sm:$0xf]
    %s286 = scalar_lea.vmem %s3, 96
    %v287 = vld [vmem:[%s286] sm:$0xff]
    %v288 = vld [vmem:[%s286 + $0x8] sm:$0xf]
    %s289 = scalar_lea.vmem %s3, 112
    %v290 = vld [vmem:[%s289] sm:$0xff]
    %v291 = vld [vmem:[%s289 + $0x8] sm:$0xf]
    %s292 = scalar_lea.vmem %s3, 128
    %v293 = vld [vmem:[%s292] sm:$0xff]
    %v294 = vld [vmem:[%s292 + $0x8] sm:$0xf]
    %295 = vrot.lane.b32.xlu0 %v179, 17
    %v296 = vpop.permute.xlu0 %295
    %297 = vrot.lane.b32.xlu0 %v185, 17
    %v298 = vpop.permute.xlu0 %297
    %299 = vrot.lane.b32.xlu0 %v181, 17
    %v300 = vpop.permute.xlu0 %299
    %301 = vrot.lane.b32.xlu0 %v187, 17
    %v302 = vpop.permute.xlu0 %301
    %303 = vrot.lane.b32.xlu0 %v256, 17
    %v304 = vpop.permute.xlu0 %303
    %305 = vrot.lane.b32.xlu0 %v262, 17
    %v306 = vpop.permute.xlu0 %305
    %307 = vrot.lane.b32.xlu0 %v258, 17
    %v308 = vpop.permute.xlu0 %307
    %309 = vrot.lane.b32.xlu0 %v264, 17
    %v310 = vpop.permute.xlu0 %309
    %vm311 = vcmp.lt.s32.totalorder %v22, 17
    %v312 = vsel %vm311, %v304, %v308
    %v313 = vsel %vm311, %v306, %v310
    %v314 = vsel %vm311, %v300, %v304
    %v315 = vsel %vm311, %v302, %v306
    %v316 = vsel %vm311, %v296, %v300
    %v317 = vsel %vm311, %v298, %v302
    %v318 = vsel %vm311, %v308, %v296
    %v319 = vsel %vm311, %v310, %v298
    %v320 = vsel %vm54, 1, 0
    %v321 = vsel %vm55, 1, 0
    %v322 = vsel %vm56, 1, 0
    %v323 = vsel %vm57, 1, 0
    %vm324 = vcmp.eq.s32.totalorder %v320, 1
    %vm325 = vcmp.eq.s32.totalorder %v321, 1
    %vm326 = vcmp.eq.s32.totalorder %v322, 1
    %vm327 = vcmp.eq.s32.totalorder %v323, 1
    %v328 = vsel %vm324, %v318, 0.0
    %v329 = vsel %vm325, %v316, 0.0
    %v330 = vsel %vm326, %v314, 0.0
    %v331 = vsel %vm327, %v312, 0.0
    %v332 = vsel %vm324, %v319, 0.0
    %v333 = vsel %vm325, %v317, 0.0
    %v334 = vsel %vm326, %v315, 0.0
    %v335 = vsel %vm327, %v313, 0.0
    %337 = vset.pattern.permute.xlu0 0
    %338 = vperm.xlu0 %337, %v269
    %v339 = vpop.permute.xlu0 %338
    %342 = vset.pattern.permute.xlu0 0
    %343 = vperm.xlu0 %342, %v270
    %v344 = vpop.permute.xlu0 %343
    %v346 = vmul.f32 %v328, %v339
    %v347 = vmul.f32 %v329, %v339
    %v348 = vmul.f32 %v330, %v339
    %v349 = vmul.f32 %v331, %v339
    %v350 = vmul.f32 %v332, %v344
    %v351 = vmul.f32 %v333, %v344
    %v352 = vmul.f32 %v334, %v344
    %v353 = vmul.f32 %v335, %v344
    %354 = vrot.lane.b32.xlu0 %v179, 16
    %v355 = vpop.permute.xlu0 %354
    %356 = vrot.lane.b32.xlu0 %v185, 16
    %v357 = vpop.permute.xlu0 %356
    %358 = vrot.lane.b32.xlu0 %v181, 16
    %v359 = vpop.permute.xlu0 %358
    %360 = vrot.lane.b32.xlu0 %v187, 16
    %v361 = vpop.permute.xlu0 %360
    %362 = vrot.lane.b32.xlu0 %v256, 16
    %v363 = vpop.permute.xlu0 %362
    %364 = vrot.lane.b32.xlu0 %v262, 16
    %v365 = vpop.permute.xlu0 %364
    %366 = vrot.lane.b32.xlu0 %v258, 16
    %v367 = vpop.permute.xlu0 %366
    %368 = vrot.lane.b32.xlu0 %v264, 16
    %v369 = vpop.permute.xlu0 %368
    %vm370 = vcmp.lt.s32.totalorder %v22, 16
    %v371 = vsel %vm370, %v363, %v367
    %v372 = vsel %vm370, %v365, %v369
    %v373 = vsel %vm370, %v359, %v363
    %v374 = vsel %vm370, %v361, %v365
    %v375 = vsel %vm370, %v355, %v359
    %v376 = vsel %vm370, %v357, %v361
    %v377 = vsel %vm370, %v367, %v355
    %v378 = vsel %vm370, %v369, %v357
    %v379 = vsel %vm38, 1, 0
    %v380 = vsel %vm39, 1, 0
    %v381 = vsel %vm40, 1, 0
    %v382 = vsel %vm41, 1, 0
    %vm383 = vcmp.eq.s32.totalorder %v379, 1
    %vm384 = vcmp.eq.s32.totalorder %v380, 1
    %vm385 = vcmp.eq.s32.totalorder %v381, 1
    %vm386 = vcmp.eq.s32.totalorder %v382, 1
    %v387 = vsel %vm383, %v377, 0.0
    %v388 = vsel %vm384, %v375, 0.0
    %v389 = vsel %vm385, %v373, 0.0
    %v390 = vsel %vm386, %v371, 0.0
    %v391 = vsel %vm383, %v378, 0.0
    %v392 = vsel %vm384, %v376, 0.0
    %v393 = vsel %vm385, %v374, 0.0
    %v394 = vsel %vm386, %v372, 0.0
    %396 = vset.pattern.permute.xlu0 0
    %397 = vperm.xlu0 %396, %v272
    %v398 = vpop.permute.xlu0 %397
    %401 = vset.pattern.permute.xlu0 0
    %402 = vperm.xlu0 %401, %v273
    %v403 = vpop.permute.xlu0 %402
    %v405 = vmul.f32 %v387, %v398
    %v406 = vmul.f32 %v388, %v398
    %v407 = vmul.f32 %v389, %v398
    %v408 = vmul.f32 %v390, %v398
    %v409 = vmul.f32 %v391, %v403
    %v410 = vmul.f32 %v392, %v403
    %v411 = vmul.f32 %v393, %v403
    %v412 = vmul.f32 %v394, %v403
    %v413 = vadd.f32 %v346, %v405
    %v414 = vadd.f32 %v347, %v406
    %v415 = vadd.f32 %v348, %v407
    %v416 = vadd.f32 %v349, %v408
    %v417 = vadd.f32 %v350, %v409
    %v418 = vadd.f32 %v351, %v410
    %v419 = vadd.f32 %v352, %v411
    %v420 = vadd.f32 %v353, %v412
    %421 = vrot.lane.b32.xlu0 %v179, 15
    %v422 = vpop.permute.xlu0 %421
    %423 = vrot.lane.b32.xlu0 %v185, 15
    %v424 = vpop.permute.xlu0 %423
    %425 = vrot.lane.b32.xlu0 %v181, 15
    %v426 = vpop.permute.xlu0 %425
    %427 = vrot.lane.b32.xlu0 %v187, 15
    %v428 = vpop.permute.xlu0 %427
    %429 = vrot.lane.b32.xlu0 %v256, 15
    %v430 = vpop.permute.xlu0 %429
    %431 = vrot.lane.b32.xlu0 %v262, 15
    %v432 = vpop.permute.xlu0 %431
    %433 = vrot.lane.b32.xlu0 %v258, 15
    %v434 = vpop.permute.xlu0 %433
    %435 = vrot.lane.b32.xlu0 %v264, 15
    %v436 = vpop.permute.xlu0 %435
    %vm437 = vcmp.lt.s32.totalorder %v22, 15
    %v438 = vsel %vm437, %v430, %v434
    %v439 = vsel %vm437, %v432, %v436
    %v440 = vsel %vm437, %v426, %v430
    %v441 = vsel %vm437, %v428, %v432
    %v442 = vsel %vm437, %v422, %v426
    %v443 = vsel %vm437, %v424, %v428
    %v444 = vsel %vm437, %v434, %v422
    %v445 = vsel %vm437, %v436, %v424
    %v446 = vsel %vm58, 1, 0
    %v447 = vsel %vm59, 1, 0
    %v448 = vsel %vm60, 1, 0
    %v449 = vsel %vm61, 1, 0
    %vm450 = vcmp.eq.s32.totalorder %v446, 1
    %vm451 = vcmp.eq.s32.totalorder %v447, 1
    %vm452 = vcmp.eq.s32.totalorder %v448, 1
    %vm453 = vcmp.eq.s32.totalorder %v449, 1
    %v454 = vsel %vm450, %v444, 0.0
    %v455 = vsel %vm451, %v442, 0.0
    %v456 = vsel %vm452, %v440, 0.0
    %v457 = vsel %vm453, %v438, 0.0
    %v458 = vsel %vm450, %v445, 0.0
    %v459 = vsel %vm451, %v443, 0.0
    %v460 = vsel %vm452, %v441, 0.0
    %v461 = vsel %vm453, %v439, 0.0
    %463 = vset.pattern.permute.xlu0 0
    %464 = vperm.xlu0 %463, %v275
    %v465 = vpop.permute.xlu0 %464
    %468 = vset.pattern.permute.xlu0 0
    %469 = vperm.xlu0 %468, %v276
    %v470 = vpop.permute.xlu0 %469
    %v472 = vmul.f32 %v454, %v465
    %v473 = vmul.f32 %v455, %v465
    %v474 = vmul.f32 %v456, %v465
    %v475 = vmul.f32 %v457, %v465
    %v476 = vmul.f32 %v458, %v470
    %v477 = vmul.f32 %v459, %v470
    %v478 = vmul.f32 %v460, %v470
    %v479 = vmul.f32 %v461, %v470
    %v480 = vadd.f32 %v413, %v472
    %v481 = vadd.f32 %v414, %v473
    %v482 = vadd.f32 %v415, %v474
    %v483 = vadd.f32 %v416, %v475
    %v484 = vadd.f32 %v417, %v476
    %v485 = vadd.f32 %v418, %v477
    %v486 = vadd.f32 %v419, %v478
    %v487 = vadd.f32 %v420, %v479
    %488 = vrot.lane.b32.xlu0 %v179, 1
    %v489 = vpop.permute.xlu0 %488
    %490 = vrot.lane.b32.xlu0 %v185, 1
    %v491 = vpop.permute.xlu0 %490
    %492 = vrot.lane.b32.xlu0 %v181, 1
    %v493 = vpop.permute.xlu0 %492
    %494 = vrot.lane.b32.xlu0 %v187, 1
    %v495 = vpop.permute.xlu0 %494
    %496 = vrot.lane.b32.xlu0 %v256, 1
    %v497 = vpop.permute.xlu0 %496
    %498 = vrot.lane.b32.xlu0 %v262, 1
    %v499 = vpop.permute.xlu0 %498
    %500 = vrot.lane.b32.xlu0 %v258, 1
    %v501 = vpop.permute.xlu0 %500
    %502 = vrot.lane.b32.xlu0 %v264, 1
    %v503 = vpop.permute.xlu0 %502
    %vm504 = vcmp.lt.s32.totalorder %v22, 1
    %v505 = vsel %vm504, %v497, %v501
    %v506 = vsel %vm504, %v499, %v503
    %v507 = vsel %vm504, %v493, %v497
    %v508 = vsel %vm504, %v495, %v499
    %v509 = vsel %vm504, %v489, %v493
    %v510 = vsel %vm504, %v491, %v495
    %v511 = vsel %vm504, %v501, %v489
    %v512 = vsel %vm504, %v503, %v491
    %v513 = vsel %vm46, 1, 0
    %v514 = vsel %vm47, 1, 0
    %v515 = vsel %vm48, 1, 0
    %v516 = vsel %vm49, 1, 0
    %vm517 = vcmp.eq.s32.totalorder %v513, 1
    %vm518 = vcmp.eq.s32.totalorder %v514, 1
    %vm519 = vcmp.eq.s32.totalorder %v515, 1
    %vm520 = vcmp.eq.s32.totalorder %v516, 1
    %v521 = vsel %vm517, %v511, 0.0
    %v522 = vsel %vm518, %v509, 0.0
    %v523 = vsel %vm519, %v507, 0.0
    %v524 = vsel %vm520, %v505, 0.0
    %v525 = vsel %vm517, %v512, 0.0
    %v526 = vsel %vm518, %v510, 0.0
    %v527 = vsel %vm519, %v508, 0.0
    %v528 = vsel %vm520, %v506, 0.0
    %530 = vset.pattern.permute.xlu0 0
    %531 = vperm.xlu0 %530, %v278
    %v532 = vpop.permute.xlu0 %531
    %535 = vset.pattern.permute.xlu0 0
    %536 = vperm.xlu0 %535, %v279
    %v537 = vpop.permute.xlu0 %536
    %v539 = vmul.f32 %v521, %v532
    %v540 = vmul.f32 %v522, %v532
    %v541 = vmul.f32 %v523, %v532
    %v542 = vmul.f32 %v524, %v532
    %v543 = vmul.f32 %v525, %v537
    %v544 = vmul.f32 %v526, %v537
    %v545 = vmul.f32 %v527, %v537
    %v546 = vmul.f32 %v528, %v537
    %v547 = vadd.f32 %v480, %v539
    %v548 = vadd.f32 %v481, %v540
    %v549 = vadd.f32 %v482, %v541
    %v550 = vadd.f32 %v483, %v542
    %v551 = vadd.f32 %v484, %v543
    %v552 = vadd.f32 %v485, %v544
    %v553 = vadd.f32 %v486, %v545
    %v554 = vadd.f32 %v487, %v546
    %556 = vset.pattern.permute.xlu0 0
    %557 = vperm.xlu0 %556, %v281
    %v558 = vpop.permute.xlu0 %557
    %561 = vset.pattern.permute.xlu0 0
    %562 = vperm.xlu0 %561, %v282
    %v563 = vpop.permute.xlu0 %562
    %v565 = vmul.f32 %v179, %v558
    %v566 = vmul.f32 %v181, %v558
    %v567 = vmul.f32 %v256, %v558
    %v568 = vmul.f32 %v258, %v558
    %v569 = vmul.f32 %v185, %v563
    %v570 = vmul.f32 %v187, %v563
    %v571 = vmul.f32 %v262, %v563
    %v572 = vmul.f32 %v264, %v563
    %v573 = vadd.f32 %v547, %v565
    %v574 = vadd.f32 %v548, %v566
    %v575 = vadd.f32 %v549, %v567
    %v576 = vadd.f32 %v550, %v568
    %v577 = vadd.f32 %v551, %v569
    %v578 = vadd.f32 %v552, %v570
    %v579 = vadd.f32 %v553, %v571
    %v580 = vadd.f32 %v554, %v572
    %581 = vrot.lane.b32.xlu0 %v179, 127
    %v582 = vpop.permute.xlu0 %581
    %583 = vrot.lane.b32.xlu0 %v185, 127
    %v584 = vpop.permute.xlu0 %583
    %585 = vrot.lane.b32.xlu0 %v181, 127
    %v586 = vpop.permute.xlu0 %585
    %587 = vrot.lane.b32.xlu0 %v187, 127
    %v588 = vpop.permute.xlu0 %587
    %589 = vrot.lane.b32.xlu0 %v256, 127
    %v590 = vpop.permute.xlu0 %589
    %591 = vrot.lane.b32.xlu0 %v262, 127
    %v592 = vpop.permute.xlu0 %591
    %593 = vrot.lane.b32.xlu0 %v258, 127
    %v594 = vpop.permute.xlu0 %593
    %595 = vrot.lane.b32.xlu0 %v264, 127
    %v596 = vpop.permute.xlu0 %595
    %vm597 = vcmp.lt.s32.totalorder %v22, 127
    %v598 = vsel %vm597, %v590, %v594
    %v599 = vsel %vm597, %v592, %v596
    %v600 = vsel %vm597, %v586, %v590
    %v601 = vsel %vm597, %v588, %v592
    %v602 = vsel %vm597, %v582, %v586
    %v603 = vsel %vm597, %v584, %v588
    %v604 = vsel %vm597, %v594, %v582
    %v605 = vsel %vm597, %v596, %v584
    %v606 = vsel %vm50, 1, 0
    %v607 = vsel %vm51, 1, 0
    %v608 = vsel %vm52, 1, 0
    %v609 = vsel %vm53, 1, 0
    %vm610 = vcmp.eq.s32.totalorder %v606, 1
    %vm611 = vcmp.eq.s32.totalorder %v607, 1
    %vm612 = vcmp.eq.s32.totalorder %v608, 1
    %vm613 = vcmp.eq.s32.totalorder %v609, 1
    %v614 = vsel %vm610, %v602, 0.0
    %v615 = vsel %vm611, %v600, 0.0
    %v616 = vsel %vm612, %v598, 0.0
    %v617 = vsel %vm613, %v604, 0.0
    %v618 = vsel %vm610, %v603, 0.0
    %v619 = vsel %vm611, %v601, 0.0
    %v620 = vsel %vm612, %v599, 0.0
    %v621 = vsel %vm613, %v605, 0.0
    %623 = vset.pattern.permute.xlu0 0
    %624 = vperm.xlu0 %623, %v284
    %v625 = vpop.permute.xlu0 %624
    %628 = vset.pattern.permute.xlu0 0
    %629 = vperm.xlu0 %628, %v285
    %v630 = vpop.permute.xlu0 %629
    %v632 = vmul.f32 %v614, %v625
    %v633 = vmul.f32 %v615, %v625
    %v634 = vmul.f32 %v616, %v625
    %v635 = vmul.f32 %v617, %v625
    %v636 = vmul.f32 %v618, %v630
    %v637 = vmul.f32 %v619, %v630
    %v638 = vmul.f32 %v620, %v630
    %v639 = vmul.f32 %v621, %v630
    %v640 = vadd.f32 %v573, %v632
    %v641 = vadd.f32 %v574, %v633
    %v642 = vadd.f32 %v575, %v634
    %v643 = vadd.f32 %v576, %v635
    %v644 = vadd.f32 %v577, %v636
    %v645 = vadd.f32 %v578, %v637
    %v646 = vadd.f32 %v579, %v638
    %v647 = vadd.f32 %v580, %v639
    %648 = vrot.lane.b32.xlu0 %v179, 113
    %v649 = vpop.permute.xlu0 %648
    %650 = vrot.lane.b32.xlu0 %v185, 113
    %v651 = vpop.permute.xlu0 %650
    %652 = vrot.lane.b32.xlu0 %v181, 113
    %v653 = vpop.permute.xlu0 %652
    %654 = vrot.lane.b32.xlu0 %v187, 113
    %v655 = vpop.permute.xlu0 %654
    %656 = vrot.lane.b32.xlu0 %v256, 113
    %v657 = vpop.permute.xlu0 %656
    %658 = vrot.lane.b32.xlu0 %v262, 113
    %v659 = vpop.permute.xlu0 %658
    %660 = vrot.lane.b32.xlu0 %v258, 113
    %v661 = vpop.permute.xlu0 %660
    %662 = vrot.lane.b32.xlu0 %v264, 113
    %v663 = vpop.permute.xlu0 %662
    %vm664 = vcmp.lt.s32.totalorder %v22, 113
    %v665 = vsel %vm664, %v657, %v661
    %v666 = vsel %vm664, %v659, %v663
    %v667 = vsel %vm664, %v653, %v657
    %v668 = vsel %vm664, %v655, %v659
    %v669 = vsel %vm664, %v649, %v653
    %v670 = vsel %vm664, %v651, %v655
    %v671 = vsel %vm664, %v661, %v649
    %v672 = vsel %vm664, %v663, %v651
    %v673 = vsel %vm62, 1, 0
    %v674 = vsel %vm63, 1, 0
    %v675 = vsel %vm64, 1, 0
    %v676 = vsel %vm65, 1, 0
    %vm677 = vcmp.eq.s32.totalorder %v673, 1
    %vm678 = vcmp.eq.s32.totalorder %v674, 1
    %vm679 = vcmp.eq.s32.totalorder %v675, 1
    %vm680 = vcmp.eq.s32.totalorder %v676, 1
    %v681 = vsel %vm677, %v669, 0.0
    %v682 = vsel %vm678, %v667, 0.0
    %v683 = vsel %vm679, %v665, 0.0
    %v684 = vsel %vm680, %v671, 0.0
    %v685 = vsel %vm677, %v670, 0.0
    %v686 = vsel %vm678, %v668, 0.0
    %v687 = vsel %vm679, %v666, 0.0
    %v688 = vsel %vm680, %v672, 0.0
    %690 = vset.pattern.permute.xlu0 0
    %691 = vperm.xlu0 %690, %v287
    %v692 = vpop.permute.xlu0 %691
    %695 = vset.pattern.permute.xlu0 0
    %696 = vperm.xlu0 %695, %v288
    %v697 = vpop.permute.xlu0 %696
    %v699 = vmul.f32 %v681, %v692
    %v700 = vmul.f32 %v682, %v692
    %v701 = vmul.f32 %v683, %v692
    %v702 = vmul.f32 %v684, %v692
    %v703 = vmul.f32 %v685, %v697
    %v704 = vmul.f32 %v686, %v697
    %v705 = vmul.f32 %v687, %v697
    %v706 = vmul.f32 %v688, %v697
    %v707 = vadd.f32 %v640, %v699
    %v708 = vadd.f32 %v641, %v700
    %v709 = vadd.f32 %v642, %v701
    %v710 = vadd.f32 %v643, %v702
    %v711 = vadd.f32 %v644, %v703
    %v712 = vadd.f32 %v645, %v704
    %v713 = vadd.f32 %v646, %v705
    %v714 = vadd.f32 %v647, %v706
    %715 = vrot.lane.b32.xlu0 %v179, 112
    %v716 = vpop.permute.xlu0 %715
    %717 = vrot.lane.b32.xlu0 %v185, 112
    %v718 = vpop.permute.xlu0 %717
    %719 = vrot.lane.b32.xlu0 %v181, 112
    %v720 = vpop.permute.xlu0 %719
    %721 = vrot.lane.b32.xlu0 %v187, 112
    %v722 = vpop.permute.xlu0 %721
    %723 = vrot.lane.b32.xlu0 %v256, 112
    %v724 = vpop.permute.xlu0 %723
    %725 = vrot.lane.b32.xlu0 %v262, 112
    %v726 = vpop.permute.xlu0 %725
    %727 = vrot.lane.b32.xlu0 %v258, 112
    %v728 = vpop.permute.xlu0 %727
    %729 = vrot.lane.b32.xlu0 %v264, 112
    %v730 = vpop.permute.xlu0 %729
    %vm731 = vcmp.lt.s32.totalorder %v22, 112
    %v732 = vsel %vm731, %v724, %v728
    %v733 = vsel %vm731, %v726, %v730
    %v734 = vsel %vm731, %v720, %v724
    %v735 = vsel %vm731, %v722, %v726
    %v736 = vsel %vm731, %v716, %v720
    %v737 = vsel %vm731, %v718, %v722
    %v738 = vsel %vm731, %v728, %v716
    %v739 = vsel %vm731, %v730, %v718
    %v740 = vsel %vm42, 1, 0
    %v741 = vsel %vm43, 1, 0
    %v742 = vsel %vm44, 1, 0
    %v743 = vsel %vm45, 1, 0
    %vm744 = vcmp.eq.s32.totalorder %v740, 1
    %vm745 = vcmp.eq.s32.totalorder %v741, 1
    %vm746 = vcmp.eq.s32.totalorder %v742, 1
    %vm747 = vcmp.eq.s32.totalorder %v743, 1
    %v748 = vsel %vm744, %v736, 0.0
    %v749 = vsel %vm745, %v734, 0.0
    %v750 = vsel %vm746, %v732, 0.0
    %v751 = vsel %vm747, %v738, 0.0
    %v752 = vsel %vm744, %v737, 0.0
    %v753 = vsel %vm745, %v735, 0.0
    %v754 = vsel %vm746, %v733, 0.0
    %v755 = vsel %vm747, %v739, 0.0
    %757 = vset.pattern.permute.xlu0 0
    %758 = vperm.xlu0 %757, %v290
    %v759 = vpop.permute.xlu0 %758
    %762 = vset.pattern.permute.xlu0 0
    %763 = vperm.xlu0 %762, %v291
    %v764 = vpop.permute.xlu0 %763
    %v766 = vmul.f32 %v748, %v759
    %v767 = vmul.f32 %v749, %v759
    %v768 = vmul.f32 %v750, %v759
    %v769 = vmul.f32 %v751, %v759
    %v770 = vmul.f32 %v752, %v764
    %v771 = vmul.f32 %v753, %v764
    %v772 = vmul.f32 %v754, %v764
    %v773 = vmul.f32 %v755, %v764
    %v774 = vadd.f32 %v707, %v766
    %v775 = vadd.f32 %v708, %v767
    %v776 = vadd.f32 %v709, %v768
    %v777 = vadd.f32 %v710, %v769
    %v778 = vadd.f32 %v711, %v770
    %v779 = vadd.f32 %v712, %v771
    %v780 = vadd.f32 %v713, %v772
    %v781 = vadd.f32 %v714, %v773
    %782 = vrot.lane.b32.xlu0 %v179, 111
    %v783 = vpop.permute.xlu0 %782
    %784 = vrot.lane.b32.xlu0 %v185, 111
    %v785 = vpop.permute.xlu0 %784
    %786 = vrot.lane.b32.xlu0 %v181, 111
    %v787 = vpop.permute.xlu0 %786
    %788 = vrot.lane.b32.xlu0 %v187, 111
    %v789 = vpop.permute.xlu0 %788
    %790 = vrot.lane.b32.xlu0 %v256, 111
    %v791 = vpop.permute.xlu0 %790
    %792 = vrot.lane.b32.xlu0 %v262, 111
    %v793 = vpop.permute.xlu0 %792
    %794 = vrot.lane.b32.xlu0 %v258, 111
    %v795 = vpop.permute.xlu0 %794
    %796 = vrot.lane.b32.xlu0 %v264, 111
    %v797 = vpop.permute.xlu0 %796
    %vm798 = vcmp.lt.s32.totalorder %v22, 111
    %v799 = vsel %vm798, %v791, %v795
    %v800 = vsel %vm798, %v793, %v797
    %v801 = vsel %vm798, %v787, %v791
    %v802 = vsel %vm798, %v789, %v793
    %v803 = vsel %vm798, %v783, %v787
    %v804 = vsel %vm798, %v785, %v789
    %v805 = vsel %vm798, %v795, %v783
    %v806 = vsel %vm798, %v797, %v785
    %v807 = vsel %vm66, 1, 0
    %v808 = vsel %vm67, 1, 0
    %v809 = vsel %vm68, 1, 0
    %v810 = vsel %vm69, 1, 0
    %vm811 = vcmp.eq.s32.totalorder %v807, 1
    %vm812 = vcmp.eq.s32.totalorder %v808, 1
    %vm813 = vcmp.eq.s32.totalorder %v809, 1
    %vm814 = vcmp.eq.s32.totalorder %v810, 1
    %v815 = vsel %vm811, %v803, 0.0
    %v816 = vsel %vm812, %v801, 0.0
    %v817 = vsel %vm813, %v799, 0.0
    %v818 = vsel %vm814, %v805, 0.0
    %v819 = vsel %vm811, %v804, 0.0
    %v820 = vsel %vm812, %v802, 0.0
    %v821 = vsel %vm813, %v800, 0.0
    %v822 = vsel %vm814, %v806, 0.0
    %824 = vset.pattern.permute.xlu0 0
    %825 = vperm.xlu0 %824, %v293
    %v826 = vpop.permute.xlu0 %825
    %829 = vset.pattern.permute.xlu0 0
    %830 = vperm.xlu0 %829, %v294
    %v831 = vpop.permute.xlu0 %830
    %v833 = vmul.f32 %v815, %v826
    %v834 = vmul.f32 %v816, %v826
    %v835 = vmul.f32 %v817, %v826
    %v836 = vmul.f32 %v818, %v826
    %v837 = vmul.f32 %v819, %v831
    %v838 = vmul.f32 %v820, %v831
    %v839 = vmul.f32 %v821, %v831
    %v840 = vmul.f32 %v822, %v831
    %v841 = vadd.f32 %v774, %v833
    %v842 = vadd.f32 %v775, %v834
    %v843 = vadd.f32 %v776, %v835
    %v844 = vadd.f32 %v777, %v836
    %v845 = vadd.f32 %v778, %v837
    %v846 = vadd.f32 %v779, %v838
    %v847 = vadd.f32 %v780, %v839
    %v848 = vadd.f32 %v781, %v840
    %850 = vset.pattern.permute.xlu0 0
    %851 = vperm.xlu0 %850, %v267
    %v852 = vpop.permute.xlu0 %851
    %855 = vset.pattern.permute.xlu0 0
    %856 = vperm.xlu0 %855, %v268
    %v857 = vpop.permute.xlu0 %856
    %v859 = vadd.f32 %v841, %v852
    %v860 = vadd.f32 %v842, %v852
    %v861 = vadd.f32 %v843, %v852
    %v862 = vadd.f32 %v844, %v852
    %v863 = vadd.f32 %v845, %v857
    %v864 = vadd.f32 %v846, %v857
    %v865 = vadd.f32 %v847, %v857
    %v866 = vadd.f32 %v848, %v857
    %v867 = vsel %vm99, %v74, 0.0
    %v868 = vsel %vm99, %v75, 0.0
    %v869 = vsel %vm99, %v76, 0.0
    %v870 = vsel %vm99, %v77, 0.0
    %v871 = vsel %vm99, %v863, 1.0
    %v872 = vsel %vm99, %v864, 1.0
    %v873 = vsel %vm99, %v865, 1.0
    %v874 = vsel %vm99, %v866, 1.0
    %vm875 = vcmask 1044480
    %v876 = vsel %vm875, %v871, 0.0
    %v877 = vsel %vm875, %v872, 0.0
    %v878 = vsel %vm875, %v873, 0.0
    %v879 = vsel %vm875, %v874, 0.0
    %v880 = vld [vmem:[%s2] sm:$0xff]
    %v881 = vld [vmem:[%s2 + $0x8] sm:$0xff]
    %v882 = vld [vmem:[%s2 + $0x10] sm:$0xff]
    %v883 = vld [vmem:[%s2 + $0x18] sm:$0xff]
    %vm884 = vcmask 261120
    %v886 = vsel %vm884, %v880, 0
    %v889 = vsel %vm884, %v881, 0
    %v892 = vsel %vm884, %v882, 0
    %v895 = vsel %vm884, %v883, 0
    %897 = vmatprep.subr.mxu0 %v71
    %898 = vmatpush1.msra.mxu0 %v70
    %899 = vmatprep.subr.mxu0 %v868
    %900 = vmatpush1.msra.mxu0 %v867
    %901 = vmatprep.subr.mxu0 %v860
    %902 = vmatpush1.msra.mxu0 %v859
    %903 = vmatprep.subr.mxu0 %v877
    %904 = vmatpush1.msra.mxu0 %v876
    %905 = vmatprep.subr.mxu0 0.0
    %906 = vmatpush1.msra.mxu0 0.0
    %907 = vmatprep.subr.mxu0 0.0
    %908 = vmatpush1.msra.mxu0 0.0
    %909 = vmatprep.subr.mxu0 0.0
    %910 = vmatpush1.msra.mxu0 0.0
    %911 = vmatprep.subr.mxu0 0.0
    %912 = vmatpush1.msra.mxu0 0.0
    %913 = vmatprep.subr.mxu0 0.0
    %914 = vmatpush1.msra.mxu0 0.0
    %915 = vmatprep.subr.mxu0 0.0
    %916 = vmatpush1.msra.mxu0 0.0
    %917 = vmatprep.subr.mxu0 0.0
    %918 = vmatpush1.msra.mxu0 0.0
    %919 = vmatprep.subr.mxu0 0.0
    %920 = vmatpush1.msra.mxu0 0.0
    %921 = vmatprep.subr.mxu0 0.0
    %922 = vmatpush1.msra.mxu0 0.0
    %923 = vmatprep.subr.mxu0 0.0
    %924 = vmatpush1.msra.mxu0 0.0
    %925 = vmatprep.subr.mxu0 0.0
    %926 = vmatpush1.msra.mxu0 0.0
    %927 = vmatprep.subr.mxu0 0.0
    %928 = vmatpush1.msra.mxu0 0.0
    %929 = vmatprep.subr.mxu0 0.0
    %930 = vmatpush1.msra.mxu0 0.0
    %931 = vmatprep.subr.mxu0 0.0
    %932 = vmatpush1.msra.mxu0 0.0
    %933 = vmatprep.subr.mxu0 0.0
    %934 = vmatpush1.msra.mxu0 0.0
    %935 = vmatprep.subr.mxu0 0.0
    %936 = vmatpush1.msra.mxu0 0.0
    %937 = vmatprep.subr.mxu0 0.0
    %938 = vmatpush1.msra.mxu0 0.0
    %939 = vmatprep.subr.mxu0 0.0
    %940 = vmatpush1.msra.mxu0 0.0
    %941 = vmatprep.subr.mxu0 0.0
    %942 = vmatpush1.msra.mxu0 0.0
    %943 = vmatprep.subr.mxu0 0.0
    %944 = vmatpush1.msra.mxu0 0.0
    %945 = vmatprep.subr.mxu0 0.0
    %946 = vmatpush1.msra.mxu0 0.0
    %947 = vmatprep.subr.mxu0 0.0
    %948 = vmatpush1.msra.mxu0 0.0
    %949 = vmatprep.subr.mxu0 0.0
    %950 = vmatpush1.msra.mxu0 0.0
    %951 = vmatprep.subr.mxu0 0.0
    %952 = vmatpush1.msra.mxu0 0.0
    %953 = vmatprep.subr.mxu0 0.0
    %954 = vmatpush1.msra.mxu0 0.0
    %955 = vmatprep.subr.mxu0 0.0
    %956 = vmatpush1.msra.mxu0 0.0
    %957 = vmatprep.subr.mxu0 0.0
    %958 = vmatpush1.msra.mxu0 0.0
    %959 = vmatprep.subr.mxu0 0.0
    %960 = vmatpush1.msra.mxu0 0.0
    %961 = vmatprep.mubr.f32.mxu0 0.0
    %962 = vmatmul.mubr.f32.gmra.mrb[0].mxu0 %v886
    %v963 = vpop.f32.mrb[0].mxu0
    %v964 = vadd.f32 0.0, %v963
    %v965 = vpop.f32.mrb[0].mxu0
    %v966 = vadd.f32 0.0, %v965
    %967 = vmatprep.mubr.f32.mxu0 0.0
    %968 = vmatmul.mubr.f32.gmra.mrb[0].mxu0 %v889
    %v969 = vpop.f32.mrb[0].mxu0
    %v970 = vadd.f32 0.0, %v969
    %v971 = vpop.f32.mrb[0].mxu0
    %v972 = vadd.f32 0.0, %v971
    %973 = vmatprep.mubr.f32.mxu0 0.0
    %974 = vmatmul.mubr.f32.gmra.mrb[0].mxu0 %v892
    %v975 = vpop.f32.mrb[0].mxu0
    %v976 = vadd.f32 0.0, %v975
    %v977 = vpop.f32.mrb[0].mxu0
    %v978 = vadd.f32 0.0, %v977
    %979 = vmatprep.mubr.f32.mxu0 0.0
    %980 = vmatmul.mubr.f32.gmra.mrb[0].mxu0 %v895
    %v981 = vpop.f32.mrb[0].mxu0
    %v982 = vadd.f32 0.0, %v981
    %v983 = vpop.f32.mrb[0].mxu0
    %v984 = vadd.f32 0.0, %v983
    %985 = vdwg.mxu0
    %986 = vmatprep.subr.mxu0 %v73
    %987 = vmatpush1.msra.mxu0 %v72
    %988 = vmatprep.subr.mxu0 %v870
    %989 = vmatpush1.msra.mxu0 %v869
    %990 = vmatprep.subr.mxu0 %v862
    %991 = vmatpush1.msra.mxu0 %v861
    %992 = vmatprep.subr.mxu0 %v879
    %993 = vmatpush1.msra.mxu0 %v878
    %994 = vmatprep.subr.mxu0 0.0
    %995 = vmatpush1.msra.mxu0 0.0
    %996 = vmatprep.subr.mxu0 0.0
    %997 = vmatpush1.msra.mxu0 0.0
    %998 = vmatprep.subr.mxu0 0.0
    %999 = vmatpush1.msra.mxu0 0.0
    %1000 = vmatprep.subr.mxu0 0.0
    %1001 = vmatpush1.msra.mxu0 0.0
    %1002 = vmatprep.subr.mxu0 0.0
    %1003 = vmatpush1.msra.mxu0 0.0
    %1004 = vmatprep.subr.mxu0 0.0
    %1005 = vmatpush1.msra.mxu0 0.0
    %1006 = vmatprep.subr.mxu0 0.0
    %1007 = vmatpush1.msra.mxu0 0.0
    %1008 = vmatprep.subr.mxu0 0.0
    %1009 = vmatpush1.msra.mxu0 0.0
    %1010 = vmatprep.subr.mxu0 0.0
    %1011 = vmatpush1.msra.mxu0 0.0
    %1012 = vmatprep.subr.mxu0 0.0
    %1013 = vmatpush1.msra.mxu0 0.0
    %1014 = vmatprep.subr.mxu0 0.0
    %1015 = vmatpush1.msra.mxu0 0.0
    %1016 = vmatprep.subr.mxu0 0.0
    %1017 = vmatpush1.msra.mxu0 0.0
    %1018 = vmatprep.subr.mxu0 0.0
    %1019 = vmatpush1.msra.mxu0 0.0
    %1020 = vmatprep.subr.mxu0 0.0
    %1021 = vmatpush1.msra.mxu0 0.0
    %1022 = vmatprep.subr.mxu0 0.0
    %1023 = vmatpush1.msra.mxu0 0.0
    %1024 = vmatprep.subr.mxu0 0.0
    %1025 = vmatpush1.msra.mxu0 0.0
    %1026 = vmatprep.subr.mxu0 0.0
    %1027 = vmatpush1.msra.mxu0 0.0
    %1028 = vmatprep.subr.mxu0 0.0
    %1029 = vmatpush1.msra.mxu0 0.0
    %1030 = vmatprep.subr.mxu0 0.0
    %1031 = vmatpush1.msra.mxu0 0.0
    %1032 = vmatprep.subr.mxu0 0.0
    %1033 = vmatpush1.msra.mxu0 0.0
    %1034 = vmatprep.subr.mxu0 0.0
    %1035 = vmatpush1.msra.mxu0 0.0
    %1036 = vmatprep.subr.mxu0 0.0
    %1037 = vmatpush1.msra.mxu0 0.0
    %1038 = vmatprep.subr.mxu0 0.0
    %1039 = vmatpush1.msra.mxu0 0.0
    %1040 = vmatprep.subr.mxu0 0.0
    %1041 = vmatpush1.msra.mxu0 0.0
    %1042 = vmatprep.subr.mxu0 0.0
    %1043 = vmatpush1.msra.mxu0 0.0
    %1044 = vmatprep.subr.mxu0 0.0
    %1045 = vmatpush1.msra.mxu0 0.0
    %1046 = vmatprep.subr.mxu0 0.0
    %1047 = vmatpush1.msra.mxu0 0.0
    %1048 = vmatprep.subr.mxu0 0.0
    %1049 = vmatpush1.msra.mxu0 0.0
    %1050 = vmatprep.mubr.f32.mxu0 0.0
    %1051 = vmatmul.mubr.f32.gmra.mrb[0].mxu0 %v886
    %v1052 = vpop.f32.mrb[0].mxu0
    %v1053 = vadd.f32 0.0, %v1052
    %v1054 = vpop.f32.mrb[0].mxu0
    %v1055 = vadd.f32 0.0, %v1054
    %1056 = vmatprep.mubr.f32.mxu0 0.0
    %1057 = vmatmul.mubr.f32.gmra.mrb[0].mxu0 %v889
    %v1058 = vpop.f32.mrb[0].mxu0
    %v1059 = vadd.f32 0.0, %v1058
    %v1060 = vpop.f32.mrb[0].mxu0
    %v1061 = vadd.f32 0.0, %v1060
    %1062 = vmatprep.mubr.f32.mxu0 0.0
    %1063 = vmatmul.mubr.f32.gmra.mrb[0].mxu0 %v892
    %v1064 = vpop.f32.mrb[0].mxu0
    %v1065 = vadd.f32 0.0, %v1064
    %v1066 = vpop.f32.mrb[0].mxu0
    %v1067 = vadd.f32 0.0, %v1066
    %1068 = vmatprep.mubr.f32.mxu0 0.0
    %1069 = vmatmul.mubr.f32.gmra.mrb[0].mxu0 %v895
    %v1070 = vpop.f32.mrb[0].mxu0
    %v1071 = vadd.f32 0.0, %v1070
    %v1072 = vpop.f32.mrb[0].mxu0
    %v1073 = vadd.f32 0.0, %v1072
    %1074 = vdwg.mxu0
    %s1075 = scalar_lea.vmem %s4, 32
    %v1076 = vld [vmem:[%s1075] sm:$0xff]
    %v1077 = vld [vmem:[%s1075 + $0x8] sm:$0xf]
    %s1078 = scalar_lea.vmem %s3, 144
    %v1079 = vld [vmem:[%s1078] sm:$0xff]
    %v1080 = vld [vmem:[%s1078 + $0x8] sm:$0xf]
    %s1081 = scalar_lea.vmem %s3, 160
    %v1082 = vld [vmem:[%s1081] sm:$0xff]
    %v1083 = vld [vmem:[%s1081 + $0x8] sm:$0xf]
    %s1084 = scalar_lea.vmem %s3, 176
    %v1085 = vld [vmem:[%s1084] sm:$0xff]
    %v1086 = vld [vmem:[%s1084 + $0x8] sm:$0xf]
    %s1087 = scalar_lea.vmem %s3, 192
    %v1088 = vld [vmem:[%s1087] sm:$0xff]
    %v1089 = vld [vmem:[%s1087 + $0x8] sm:$0xf]
    %s1090 = scalar_lea.vmem %s3, 208
    %v1091 = vld [vmem:[%s1090] sm:$0xff]
    %v1092 = vld [vmem:[%s1090 + $0x8] sm:$0xf]
    %s1093 = scalar_lea.vmem %s3, 224
    %v1094 = vld [vmem:[%s1093] sm:$0xff]
    %v1095 = vld [vmem:[%s1093 + $0x8] sm:$0xf]
    %s1096 = scalar_lea.vmem %s3, 240
    %v1097 = vld [vmem:[%s1096] sm:$0xff]
    %v1098 = vld [vmem:[%s1096 + $0x8] sm:$0xf]
    %s1099 = scalar_lea.vmem %s3, 256
    %v1100 = vld [vmem:[%s1099] sm:$0xff]
    %v1101 = vld [vmem:[%s1099 + $0x8] sm:$0xf]
    %s1102 = scalar_lea.vmem %s3, 272
    %v1103 = vld [vmem:[%s1102] sm:$0xff]
    %v1104 = vld [vmem:[%s1102 + $0x8] sm:$0xf]
    %1105 = vrot.lane.b32.xlu0 %v976, 17
    %v1106 = vpop.permute.xlu0 %1105
    %1107 = vrot.lane.b32.xlu0 %v982, 17
    %v1108 = vpop.permute.xlu0 %1107
    %1109 = vrot.lane.b32.xlu0 %v978, 17
    %v1110 = vpop.permute.xlu0 %1109
    %1111 = vrot.lane.b32.xlu0 %v984, 17
    %v1112 = vpop.permute.xlu0 %1111
    %1113 = vrot.lane.b32.xlu0 %v1065, 17
    %v1114 = vpop.permute.xlu0 %1113
    %1115 = vrot.lane.b32.xlu0 %v1071, 17
    %v1116 = vpop.permute.xlu0 %1115
    %1117 = vrot.lane.b32.xlu0 %v1067, 17
    %v1118 = vpop.permute.xlu0 %1117
    %1119 = vrot.lane.b32.xlu0 %v1073, 17
    %v1120 = vpop.permute.xlu0 %1119
    %v1121 = vsel %vm311, %v1114, %v1118
    %v1122 = vsel %vm311, %v1116, %v1120
    %v1123 = vsel %vm311, %v1110, %v1114
    %v1124 = vsel %vm311, %v1112, %v1116
    %v1125 = vsel %vm311, %v1106, %v1110
    %v1126 = vsel %vm311, %v1108, %v1112
    %v1127 = vsel %vm311, %v1118, %v1106
    %v1128 = vsel %vm311, %v1120, %v1108
    %v1129 = vsel %vm324, %v1127, 0.0
    %v1130 = vsel %vm325, %v1125, 0.0
    %v1131 = vsel %vm326, %v1123, 0.0
    %v1132 = vsel %vm327, %v1121, 0.0
    %v1133 = vsel %vm324, %v1128, 0.0
    %v1134 = vsel %vm325, %v1126, 0.0
    %v1135 = vsel %vm326, %v1124, 0.0
    %v1136 = vsel %vm327, %v1122, 0.0
    %1138 = vset.pattern.permute.xlu0 0
    %1139 = vperm.xlu0 %1138, %v1079
    %v1140 = vpop.permute.xlu0 %1139
    %1143 = vset.pattern.permute.xlu0 0
    %1144 = vperm.xlu0 %1143, %v1080
    %v1145 = vpop.permute.xlu0 %1144
    %v1147 = vmul.f32 %v1129, %v1140
    %v1148 = vmul.f32 %v1130, %v1140
    %v1149 = vmul.f32 %v1131, %v1140
    %v1150 = vmul.f32 %v1132, %v1140
    %v1151 = vmul.f32 %v1133, %v1145
    %v1152 = vmul.f32 %v1134, %v1145
    %v1153 = vmul.f32 %v1135, %v1145
    %v1154 = vmul.f32 %v1136, %v1145
    %1155 = vrot.lane.b32.xlu0 %v976, 16
    %v1156 = vpop.permute.xlu0 %1155
    %1157 = vrot.lane.b32.xlu0 %v982, 16
    %v1158 = vpop.permute.xlu0 %1157
    %1159 = vrot.lane.b32.xlu0 %v978, 16
    %v1160 = vpop.permute.xlu0 %1159
    %1161 = vrot.lane.b32.xlu0 %v984, 16
    %v1162 = vpop.permute.xlu0 %1161
    %1163 = vrot.lane.b32.xlu0 %v1065, 16
    %v1164 = vpop.permute.xlu0 %1163
    %1165 = vrot.lane.b32.xlu0 %v1071, 16
    %v1166 = vpop.permute.xlu0 %1165
    %1167 = vrot.lane.b32.xlu0 %v1067, 16
    %v1168 = vpop.permute.xlu0 %1167
    %1169 = vrot.lane.b32.xlu0 %v1073, 16
    %v1170 = vpop.permute.xlu0 %1169
    %v1171 = vsel %vm370, %v1164, %v1168
    %v1172 = vsel %vm370, %v1166, %v1170
    %v1173 = vsel %vm370, %v1160, %v1164
    %v1174 = vsel %vm370, %v1162, %v1166
    %v1175 = vsel %vm370, %v1156, %v1160
    %v1176 = vsel %vm370, %v1158, %v1162
    %v1177 = vsel %vm370, %v1168, %v1156
    %v1178 = vsel %vm370, %v1170, %v1158
    %v1179 = vsel %vm383, %v1177, 0.0
    %v1180 = vsel %vm384, %v1175, 0.0
    %v1181 = vsel %vm385, %v1173, 0.0
    %v1182 = vsel %vm386, %v1171, 0.0
    %v1183 = vsel %vm383, %v1178, 0.0
    %v1184 = vsel %vm384, %v1176, 0.0
    %v1185 = vsel %vm385, %v1174, 0.0
    %v1186 = vsel %vm386, %v1172, 0.0
    %1188 = vset.pattern.permute.xlu0 0
    %1189 = vperm.xlu0 %1188, %v1082
    %v1190 = vpop.permute.xlu0 %1189
    %1193 = vset.pattern.permute.xlu0 0
    %1194 = vperm.xlu0 %1193, %v1083
    %v1195 = vpop.permute.xlu0 %1194
    %v1197 = vmul.f32 %v1179, %v1190
    %v1198 = vmul.f32 %v1180, %v1190
    %v1199 = vmul.f32 %v1181, %v1190
    %v1200 = vmul.f32 %v1182, %v1190
    %v1201 = vmul.f32 %v1183, %v1195
    %v1202 = vmul.f32 %v1184, %v1195
    %v1203 = vmul.f32 %v1185, %v1195
    %v1204 = vmul.f32 %v1186, %v1195
    %v1205 = vadd.f32 %v1147, %v1197
    %v1206 = vadd.f32 %v1148, %v1198
    %v1207 = vadd.f32 %v1149, %v1199
    %v1208 = vadd.f32 %v1150, %v1200
    %v1209 = vadd.f32 %v1151, %v1201
    %v1210 = vadd.f32 %v1152, %v1202
    %v1211 = vadd.f32 %v1153, %v1203
    %v1212 = vadd.f32 %v1154, %v1204
    %1213 = vrot.lane.b32.xlu0 %v976, 15
    %v1214 = vpop.permute.xlu0 %1213
    %1215 = vrot.lane.b32.xlu0 %v982, 15
    %v1216 = vpop.permute.xlu0 %1215
    %1217 = vrot.lane.b32.xlu0 %v978, 15
    %v1218 = vpop.permute.xlu0 %1217
    %1219 = vrot.lane.b32.xlu0 %v984, 15
    %v1220 = vpop.permute.xlu0 %1219
    %1221 = vrot.lane.b32.xlu0 %v1065, 15
    %v1222 = vpop.permute.xlu0 %1221
    %1223 = vrot.lane.b32.xlu0 %v1071, 15
    %v1224 = vpop.permute.xlu0 %1223
    %1225 = vrot.lane.b32.xlu0 %v1067, 15
    %v1226 = vpop.permute.xlu0 %1225
    %1227 = vrot.lane.b32.xlu0 %v1073, 15
    %v1228 = vpop.permute.xlu0 %1227
    %v1229 = vsel %vm437, %v1222, %v1226
    %v1230 = vsel %vm437, %v1224, %v1228
    %v1231 = vsel %vm437, %v1218, %v1222
    %v1232 = vsel %vm437, %v1220, %v1224
    %v1233 = vsel %vm437, %v1214, %v1218
    %v1234 = vsel %vm437, %v1216, %v1220
    %v1235 = vsel %vm437, %v1226, %v1214
    %v1236 = vsel %vm437, %v1228, %v1216
    %v1237 = vsel %vm450, %v1235, 0.0
    %v1238 = vsel %vm451, %v1233, 0.0
    %v1239 = vsel %vm452, %v1231, 0.0
    %v1240 = vsel %vm453, %v1229, 0.0
    %v1241 = vsel %vm450, %v1236, 0.0
    %v1242 = vsel %vm451, %v1234, 0.0
    %v1243 = vsel %vm452, %v1232, 0.0
    %v1244 = vsel %vm453, %v1230, 0.0
    %1246 = vset.pattern.permute.xlu0 0
    %1247 = vperm.xlu0 %1246, %v1085
    %v1248 = vpop.permute.xlu0 %1247
    %1251 = vset.pattern.permute.xlu0 0
    %1252 = vperm.xlu0 %1251, %v1086
    %v1253 = vpop.permute.xlu0 %1252
    %v1255 = vmul.f32 %v1237, %v1248
    %v1256 = vmul.f32 %v1238, %v1248
    %v1257 = vmul.f32 %v1239, %v1248
    %v1258 = vmul.f32 %v1240, %v1248
    %v1259 = vmul.f32 %v1241, %v1253
    %v1260 = vmul.f32 %v1242, %v1253
    %v1261 = vmul.f32 %v1243, %v1253
    %v1262 = vmul.f32 %v1244, %v1253
    %v1263 = vadd.f32 %v1205, %v1255
    %v1264 = vadd.f32 %v1206, %v1256
    %v1265 = vadd.f32 %v1207, %v1257
    %v1266 = vadd.f32 %v1208, %v1258
    %v1267 = vadd.f32 %v1209, %v1259
    %v1268 = vadd.f32 %v1210, %v1260
    %v1269 = vadd.f32 %v1211, %v1261
    %v1270 = vadd.f32 %v1212, %v1262
    %1271 = vrot.lane.b32.xlu0 %v976, 1
    %v1272 = vpop.permute.xlu0 %1271
    %1273 = vrot.lane.b32.xlu0 %v982, 1
    %v1274 = vpop.permute.xlu0 %1273
    %1275 = vrot.lane.b32.xlu0 %v978, 1
    %v1276 = vpop.permute.xlu0 %1275
    %1277 = vrot.lane.b32.xlu0 %v984, 1
    %v1278 = vpop.permute.xlu0 %1277
    %1279 = vrot.lane.b32.xlu0 %v1065, 1
    %v1280 = vpop.permute.xlu0 %1279
    %1281 = vrot.lane.b32.xlu0 %v1071, 1
    %v1282 = vpop.permute.xlu0 %1281
    %1283 = vrot.lane.b32.xlu0 %v1067, 1
    %v1284 = vpop.permute.xlu0 %1283
    %1285 = vrot.lane.b32.xlu0 %v1073, 1
    %v1286 = vpop.permute.xlu0 %1285
    %v1287 = vsel %vm504, %v1280, %v1284
    %v1288 = vsel %vm504, %v1282, %v1286
    %v1289 = vsel %vm504, %v1276, %v1280
    %v1290 = vsel %vm504, %v1278, %v1282
    %v1291 = vsel %vm504, %v1272, %v1276
    %v1292 = vsel %vm504, %v1274, %v1278
    %v1293 = vsel %vm504, %v1284, %v1272
    %v1294 = vsel %vm504, %v1286, %v1274
    %v1295 = vsel %vm517, %v1293, 0.0
    %v1296 = vsel %vm518, %v1291, 0.0
    %v1297 = vsel %vm519, %v1289, 0.0
    %v1298 = vsel %vm520, %v1287, 0.0
    %v1299 = vsel %vm517, %v1294, 0.0
    %v1300 = vsel %vm518, %v1292, 0.0
    %v1301 = vsel %vm519, %v1290, 0.0
    %v1302 = vsel %vm520, %v1288, 0.0
    %1304 = vset.pattern.permute.xlu0 0
    %1305 = vperm.xlu0 %1304, %v1088
    %v1306 = vpop.permute.xlu0 %1305
    %1309 = vset.pattern.permute.xlu0 0
    %1310 = vperm.xlu0 %1309, %v1089
    %v1311 = vpop.permute.xlu0 %1310
    %v1313 = vmul.f32 %v1295, %v1306
    %v1314 = vmul.f32 %v1296, %v1306
    %v1315 = vmul.f32 %v1297, %v1306
    %v1316 = vmul.f32 %v1298, %v1306
    %v1317 = vmul.f32 %v1299, %v1311
    %v1318 = vmul.f32 %v1300, %v1311
    %v1319 = vmul.f32 %v1301, %v1311
    %v1320 = vmul.f32 %v1302, %v1311
    %v1321 = vadd.f32 %v1263, %v1313
    %v1322 = vadd.f32 %v1264, %v1314
    %v1323 = vadd.f32 %v1265, %v1315
    %v1324 = vadd.f32 %v1266, %v1316
    %v1325 = vadd.f32 %v1267, %v1317
    %v1326 = vadd.f32 %v1268, %v1318
    %v1327 = vadd.f32 %v1269, %v1319
    %v1328 = vadd.f32 %v1270, %v1320
    %1330 = vset.pattern.permute.xlu0 0
    %1331 = vperm.xlu0 %1330, %v1091
    %v1332 = vpop.permute.xlu0 %1331
    %1335 = vset.pattern.permute.xlu0 0
    %1336 = vperm.xlu0 %1335, %v1092
    %v1337 = vpop.permute.xlu0 %1336
    %v1339 = vmul.f32 %v976, %v1332
    %v1340 = vmul.f32 %v978, %v1332
    %v1341 = vmul.f32 %v1065, %v1332
    %v1342 = vmul.f32 %v1067, %v1332
    %v1343 = vmul.f32 %v982, %v1337
    %v1344 = vmul.f32 %v984, %v1337
    %v1345 = vmul.f32 %v1071, %v1337
    %v1346 = vmul.f32 %v1073, %v1337
    %v1347 = vadd.f32 %v1321, %v1339
    %v1348 = vadd.f32 %v1322, %v1340
    %v1349 = vadd.f32 %v1323, %v1341
    %v1350 = vadd.f32 %v1324, %v1342
    %v1351 = vadd.f32 %v1325, %v1343
    %v1352 = vadd.f32 %v1326, %v1344
    %v1353 = vadd.f32 %v1327, %v1345
    %v1354 = vadd.f32 %v1328, %v1346
    %1355 = vrot.lane.b32.xlu0 %v976, 127
    %v1356 = vpop.permute.xlu0 %1355
    %1357 = vrot.lane.b32.xlu0 %v982, 127
    %v1358 = vpop.permute.xlu0 %1357
    %1359 = vrot.lane.b32.xlu0 %v978, 127
    %v1360 = vpop.permute.xlu0 %1359
    %1361 = vrot.lane.b32.xlu0 %v984, 127
    %v1362 = vpop.permute.xlu0 %1361
    %1363 = vrot.lane.b32.xlu0 %v1065, 127
    %v1364 = vpop.permute.xlu0 %1363
    %1365 = vrot.lane.b32.xlu0 %v1071, 127
    %v1366 = vpop.permute.xlu0 %1365
    %1367 = vrot.lane.b32.xlu0 %v1067, 127
    %v1368 = vpop.permute.xlu0 %1367
    %1369 = vrot.lane.b32.xlu0 %v1073, 127
    %v1370 = vpop.permute.xlu0 %1369
    %v1371 = vsel %vm597, %v1364, %v1368
    %v1372 = vsel %vm597, %v1366, %v1370
    %v1373 = vsel %vm597, %v1360, %v1364
    %v1374 = vsel %vm597, %v1362, %v1366
    %v1375 = vsel %vm597, %v1356, %v1360
    %v1376 = vsel %vm597, %v1358, %v1362
    %v1377 = vsel %vm597, %v1368, %v1356
    %v1378 = vsel %vm597, %v1370, %v1358
    %v1379 = vsel %vm610, %v1375, 0.0
    %v1380 = vsel %vm611, %v1373, 0.0
    %v1381 = vsel %vm612, %v1371, 0.0
    %v1382 = vsel %vm613, %v1377, 0.0
    %v1383 = vsel %vm610, %v1376, 0.0
    %v1384 = vsel %vm611, %v1374, 0.0
    %v1385 = vsel %vm612, %v1372, 0.0
    %v1386 = vsel %vm613, %v1378, 0.0
    %1388 = vset.pattern.permute.xlu0 0
    %1389 = vperm.xlu0 %1388, %v1094
    %v1390 = vpop.permute.xlu0 %1389
    %1393 = vset.pattern.permute.xlu0 0
    %1394 = vperm.xlu0 %1393, %v1095
    %v1395 = vpop.permute.xlu0 %1394
    %v1397 = vmul.f32 %v1379, %v1390
    %v1398 = vmul.f32 %v1380, %v1390
    %v1399 = vmul.f32 %v1381, %v1390
    %v1400 = vmul.f32 %v1382, %v1390
    %v1401 = vmul.f32 %v1383, %v1395
    %v1402 = vmul.f32 %v1384, %v1395
    %v1403 = vmul.f32 %v1385, %v1395
    %v1404 = vmul.f32 %v1386, %v1395
    %v1405 = vadd.f32 %v1347, %v1397
    %v1406 = vadd.f32 %v1348, %v1398
    %v1407 = vadd.f32 %v1349, %v1399
    %v1408 = vadd.f32 %v1350, %v1400
    %v1409 = vadd.f32 %v1351, %v1401
    %v1410 = vadd.f32 %v1352, %v1402
    %v1411 = vadd.f32 %v1353, %v1403
    %v1412 = vadd.f32 %v1354, %v1404
    %1413 = vrot.lane.b32.xlu0 %v976, 113
    %v1414 = vpop.permute.xlu0 %1413
    %1415 = vrot.lane.b32.xlu0 %v982, 113
    %v1416 = vpop.permute.xlu0 %1415
    %1417 = vrot.lane.b32.xlu0 %v978, 113
    %v1418 = vpop.permute.xlu0 %1417
    %1419 = vrot.lane.b32.xlu0 %v984, 113
    %v1420 = vpop.permute.xlu0 %1419
    %1421 = vrot.lane.b32.xlu0 %v1065, 113
    %v1422 = vpop.permute.xlu0 %1421
    %1423 = vrot.lane.b32.xlu0 %v1071, 113
    %v1424 = vpop.permute.xlu0 %1423
    %1425 = vrot.lane.b32.xlu0 %v1067, 113
    %v1426 = vpop.permute.xlu0 %1425
    %1427 = vrot.lane.b32.xlu0 %v1073, 113
    %v1428 = vpop.permute.xlu0 %1427
    %v1429 = vsel %vm664, %v1422, %v1426
    %v1430 = vsel %vm664, %v1424, %v1428
    %v1431 = vsel %vm664, %v1418, %v1422
    %v1432 = vsel %vm664, %v1420, %v1424
    %v1433 = vsel %vm664, %v1414, %v1418
    %v1434 = vsel %vm664, %v1416, %v1420
    %v1435 = vsel %vm664, %v1426, %v1414
    %v1436 = vsel %vm664, %v1428, %v1416
    %v1437 = vsel %vm677, %v1433, 0.0
    %v1438 = vsel %vm678, %v1431, 0.0
    %v1439 = vsel %vm679, %v1429, 0.0
    %v1440 = vsel %vm680, %v1435, 0.0
    %v1441 = vsel %vm677, %v1434, 0.0
    %v1442 = vsel %vm678, %v1432, 0.0
    %v1443 = vsel %vm679, %v1430, 0.0
    %v1444 = vsel %vm680, %v1436, 0.0
    %1446 = vset.pattern.permute.xlu0 0
    %1447 = vperm.xlu0 %1446, %v1097
    %v1448 = vpop.permute.xlu0 %1447
    %1451 = vset.pattern.permute.xlu0 0
    %1452 = vperm.xlu0 %1451, %v1098
    %v1453 = vpop.permute.xlu0 %1452
    %v1455 = vmul.f32 %v1437, %v1448
    %v1456 = vmul.f32 %v1438, %v1448
    %v1457 = vmul.f32 %v1439, %v1448
    %v1458 = vmul.f32 %v1440, %v1448
    %v1459 = vmul.f32 %v1441, %v1453
    %v1460 = vmul.f32 %v1442, %v1453
    %v1461 = vmul.f32 %v1443, %v1453
    %v1462 = vmul.f32 %v1444, %v1453
    %v1463 = vadd.f32 %v1405, %v1455
    %v1464 = vadd.f32 %v1406, %v1456
    %v1465 = vadd.f32 %v1407, %v1457
    %v1466 = vadd.f32 %v1408, %v1458
    %v1467 = vadd.f32 %v1409, %v1459
    %v1468 = vadd.f32 %v1410, %v1460
    %v1469 = vadd.f32 %v1411, %v1461
    %v1470 = vadd.f32 %v1412, %v1462
    %1471 = vrot.lane.b32.xlu0 %v976, 112
    %v1472 = vpop.permute.xlu0 %1471
    %1473 = vrot.lane.b32.xlu0 %v982, 112
    %v1474 = vpop.permute.xlu0 %1473
    %1475 = vrot.lane.b32.xlu0 %v978, 112
    %v1476 = vpop.permute.xlu0 %1475
    %1477 = vrot.lane.b32.xlu0 %v984, 112
    %v1478 = vpop.permute.xlu0 %1477
    %1479 = vrot.lane.b32.xlu0 %v1065, 112
    %v1480 = vpop.permute.xlu0 %1479
    %1481 = vrot.lane.b32.xlu0 %v1071, 112
    %v1482 = vpop.permute.xlu0 %1481
    %1483 = vrot.lane.b32.xlu0 %v1067, 112
    %v1484 = vpop.permute.xlu0 %1483
    %1485 = vrot.lane.b32.xlu0 %v1073, 112
    %v1486 = vpop.permute.xlu0 %1485
    %v1487 = vsel %vm731, %v1480, %v1484
    %v1488 = vsel %vm731, %v1482, %v1486
    %v1489 = vsel %vm731, %v1476, %v1480
    %v1490 = vsel %vm731, %v1478, %v1482
    %v1491 = vsel %vm731, %v1472, %v1476
    %v1492 = vsel %vm731, %v1474, %v1478
    %v1493 = vsel %vm731, %v1484, %v1472
    %v1494 = vsel %vm731, %v1486, %v1474
    %v1495 = vsel %vm744, %v1491, 0.0
    %v1496 = vsel %vm745, %v1489, 0.0
    %v1497 = vsel %vm746, %v1487, 0.0
    %v1498 = vsel %vm747, %v1493, 0.0
    %v1499 = vsel %vm744, %v1492, 0.0
    %v1500 = vsel %vm745, %v1490, 0.0
    %v1501 = vsel %vm746, %v1488, 0.0
    %v1502 = vsel %vm747, %v1494, 0.0
    %1504 = vset.pattern.permute.xlu0 0
    %1505 = vperm.xlu0 %1504, %v1100
    %v1506 = vpop.permute.xlu0 %1505
    %1509 = vset.pattern.permute.xlu0 0
    %1510 = vperm.xlu0 %1509, %v1101
    %v1511 = vpop.permute.xlu0 %1510
    %v1513 = vmul.f32 %v1495, %v1506
    %v1514 = vmul.f32 %v1496, %v1506
    %v1515 = vmul.f32 %v1497, %v1506
    %v1516 = vmul.f32 %v1498, %v1506
    %v1517 = vmul.f32 %v1499, %v1511
    %v1518 = vmul.f32 %v1500, %v1511
    %v1519 = vmul.f32 %v1501, %v1511
    %v1520 = vmul.f32 %v1502, %v1511
    %v1521 = vadd.f32 %v1463, %v1513
    %v1522 = vadd.f32 %v1464, %v1514
    %v1523 = vadd.f32 %v1465, %v1515
    %v1524 = vadd.f32 %v1466, %v1516
    %v1525 = vadd.f32 %v1467, %v1517
    %v1526 = vadd.f32 %v1468, %v1518
    %v1527 = vadd.f32 %v1469, %v1519
    %v1528 = vadd.f32 %v1470, %v1520
    %1529 = vrot.lane.b32.xlu0 %v976, 111
    %v1530 = vpop.permute.xlu0 %1529
    %1531 = vrot.lane.b32.xlu0 %v982, 111
    %v1532 = vpop.permute.xlu0 %1531
    %1533 = vrot.lane.b32.xlu0 %v978, 111
    %v1534 = vpop.permute.xlu0 %1533
    %1535 = vrot.lane.b32.xlu0 %v984, 111
    %v1536 = vpop.permute.xlu0 %1535
    %1537 = vrot.lane.b32.xlu0 %v1065, 111
    %v1538 = vpop.permute.xlu0 %1537
    %1539 = vrot.lane.b32.xlu0 %v1071, 111
    %v1540 = vpop.permute.xlu0 %1539
    %1541 = vrot.lane.b32.xlu0 %v1067, 111
    %v1542 = vpop.permute.xlu0 %1541
    %1543 = vrot.lane.b32.xlu0 %v1073, 111
    %v1544 = vpop.permute.xlu0 %1543
    %v1545 = vsel %vm798, %v1538, %v1542
    %v1546 = vsel %vm798, %v1540, %v1544
    %v1547 = vsel %vm798, %v1534, %v1538
    %v1548 = vsel %vm798, %v1536, %v1540
    %v1549 = vsel %vm798, %v1530, %v1534
    %v1550 = vsel %vm798, %v1532, %v1536
    %v1551 = vsel %vm798, %v1542, %v1530
    %v1552 = vsel %vm798, %v1544, %v1532
    %v1553 = vsel %vm811, %v1549, 0.0
    %v1554 = vsel %vm812, %v1547, 0.0
    %v1555 = vsel %vm813, %v1545, 0.0
    %v1556 = vsel %vm814, %v1551, 0.0
    %v1557 = vsel %vm811, %v1550, 0.0
    %v1558 = vsel %vm812, %v1548, 0.0
    %v1559 = vsel %vm813, %v1546, 0.0
    %v1560 = vsel %vm814, %v1552, 0.0
    %1562 = vset.pattern.permute.xlu0 0
    %1563 = vperm.xlu0 %1562, %v1103
    %v1564 = vpop.permute.xlu0 %1563
    %1567 = vset.pattern.permute.xlu0 0
    %1568 = vperm.xlu0 %1567, %v1104
    %v1569 = vpop.permute.xlu0 %1568
    %v1571 = vmul.f32 %v1553, %v1564
    %v1572 = vmul.f32 %v1554, %v1564
    %v1573 = vmul.f32 %v1555, %v1564
    %v1574 = vmul.f32 %v1556, %v1564
    %v1575 = vmul.f32 %v1557, %v1569
    %v1576 = vmul.f32 %v1558, %v1569
    %v1577 = vmul.f32 %v1559, %v1569
    %v1578 = vmul.f32 %v1560, %v1569
    %v1579 = vadd.f32 %v1521, %v1571
    %v1580 = vadd.f32 %v1522, %v1572
    %v1581 = vadd.f32 %v1523, %v1573
    %v1582 = vadd.f32 %v1524, %v1574
    %v1583 = vadd.f32 %v1525, %v1575
    %v1584 = vadd.f32 %v1526, %v1576
    %v1585 = vadd.f32 %v1527, %v1577
    %v1586 = vadd.f32 %v1528, %v1578
    %1588 = vset.pattern.permute.xlu0 0
    %1589 = vperm.xlu0 %1588, %v1076
    %v1590 = vpop.permute.xlu0 %1589
    %1593 = vset.pattern.permute.xlu0 0
    %1594 = vperm.xlu0 %1593, %v1077
    %v1595 = vpop.permute.xlu0 %1594
    %v1597 = vadd.f32 %v1579, %v1590
    %v1598 = vadd.f32 %v1580, %v1590
    %v1599 = vadd.f32 %v1581, %v1590
    %v1600 = vadd.f32 %v1582, %v1590
    %v1601 = vadd.f32 %v1583, %v1595
    %v1602 = vadd.f32 %v1584, %v1595
    %v1603 = vadd.f32 %v1585, %v1595
    %v1604 = vadd.f32 %v1586, %v1595
    %s1605 = scalar_lea.vmem %s1, 16
    %v1606 = vld [vmem:[%s1605] sm:$0xff]
    %v1607 = vld [vmem:[%s1605 + $0x8] sm:$0xf]
    %s1608 = scalar_lea.vmem %s4, 48
    %v1609 = vld [vmem:[%s1608] sm:$0xff]
    %v1610 = vld [vmem:[%s1608 + $0x8] sm:$0xf]
    %1612 = vset.pattern.permute.xlu0 0
    %1613 = vperm.xlu0 %1612, %v1609
    %v1614 = vpop.permute.xlu0 %1613
    %1617 = vset.pattern.permute.xlu0 0
    %1618 = vperm.xlu0 %1617, %v1610
    %v1619 = vpop.permute.xlu0 %1618
    %v1622 = vsel %vm92, %v1606, 0
    %v1625 = vsel %vm92, %v1607, 0
    %v1628 = vsel %vm99, %v1601, 0
    %v1631 = vsel %vm99, %v1602, 0
    %v1634 = vsel %vm99, %v1603, 0
    %v1637 = vsel %vm99, %v1604, 0
    %1639 = vmatprep.subr.mxu0 %v1598
    %1640 = vmatpush1.msra.mxu0 %v1597
    %1641 = vmatprep.subr.mxu0 %v1631
    %1642 = vmatpush1.msra.mxu0 %v1628
    %1643 = vmatprep.subr.mxu0 0.0
    %1644 = vmatpush1.msra.mxu0 0.0
    %1645 = vmatprep.subr.mxu0 0.0
    %1646 = vmatpush1.msra.mxu0 0.0
    %1647 = vmatprep.subr.mxu0 0.0
    %1648 = vmatpush1.msra.mxu0 0.0
    %1649 = vmatprep.subr.mxu0 0.0
    %1650 = vmatpush1.msra.mxu0 0.0
    %1651 = vmatprep.subr.mxu0 0.0
    %1652 = vmatpush1.msra.mxu0 0.0
    %1653 = vmatprep.subr.mxu0 0.0
    %1654 = vmatpush1.msra.mxu0 0.0
    %1655 = vmatprep.subr.mxu0 0.0
    %1656 = vmatpush1.msra.mxu0 0.0
    %1657 = vmatprep.subr.mxu0 0.0
    %1658 = vmatpush1.msra.mxu0 0.0
    %1659 = vmatprep.subr.mxu0 0.0
    %1660 = vmatpush1.msra.mxu0 0.0
    %1661 = vmatprep.subr.mxu0 0.0
    %1662 = vmatpush1.msra.mxu0 0.0
    %1663 = vmatprep.subr.mxu0 0.0
    %1664 = vmatpush1.msra.mxu0 0.0
    %1665 = vmatprep.subr.mxu0 0.0
    %1666 = vmatpush1.msra.mxu0 0.0
    %1667 = vmatprep.subr.mxu0 0.0
    %1668 = vmatpush1.msra.mxu0 0.0
    %1669 = vmatprep.subr.mxu0 0.0
    %1670 = vmatpush1.msra.mxu0 0.0
    %1671 = vmatprep.subr.mxu0 0.0
    %1672 = vmatpush1.msra.mxu0 0.0
    %1673 = vmatprep.subr.mxu0 0.0
    %1674 = vmatpush1.msra.mxu0 0.0
    %1675 = vmatprep.subr.mxu0 0.0
    %1676 = vmatpush1.msra.mxu0 0.0
    %1677 = vmatprep.subr.mxu0 0.0
    %1678 = vmatpush1.msra.mxu0 0.0
    %1679 = vmatprep.subr.mxu0 0.0
    %1680 = vmatpush1.msra.mxu0 0.0
    %1681 = vmatprep.subr.mxu0 0.0
    %1682 = vmatpush1.msra.mxu0 0.0
    %1683 = vmatprep.subr.mxu0 0.0
    %1684 = vmatpush1.msra.mxu0 0.0
    %1685 = vmatprep.subr.mxu0 0.0
    %1686 = vmatpush1.msra.mxu0 0.0
    %1687 = vmatprep.subr.mxu0 0.0
    %1688 = vmatpush1.msra.mxu0 0.0
    %1689 = vmatprep.subr.mxu0 0.0
    %1690 = vmatpush1.msra.mxu0 0.0
    %1691 = vmatprep.subr.mxu0 0.0
    %1692 = vmatpush1.msra.mxu0 0.0
    %1693 = vmatprep.subr.mxu0 0.0
    %1694 = vmatpush1.msra.mxu0 0.0
    %1695 = vmatprep.subr.mxu0 0.0
    %1696 = vmatpush1.msra.mxu0 0.0
    %1697 = vmatprep.subr.mxu0 0.0
    %1698 = vmatpush1.msra.mxu0 0.0
    %1699 = vmatprep.subr.mxu0 0.0
    %1700 = vmatpush1.msra.mxu0 0.0
    %1701 = vmatprep.subr.mxu0 0.0
    %1702 = vmatpush1.msra.mxu0 0.0
    %1703 = vmatprep.mubr.f32.mxu0 0.0
    %1704 = vmatmul.mubr.f32.gmra.mrb[0].mxu0 %v1622
    %v1705 = vpop.f32.mrb[0].mxu0
    %v1706 = vadd.f32 %v1614, %v1705
    %v1707 = vpop.f32.mrb[0].mxu0
    %v1708 = vadd.f32 %v1614, %v1707
    %1709 = vmatprep.mubr.f32.mxu0 0.0
    %1710 = vmatmul.mubr.f32.gmra.mrb[0].mxu0 %v1625
    %v1711 = vpop.f32.mrb[0].mxu0
    %v1712 = vadd.f32 %v1619, %v1711
    %v1713 = vpop.f32.mrb[0].mxu0
    %v1714 = vadd.f32 %v1619, %v1713
    %1715 = vdwg.mxu0
    %1716 = vmatprep.subr.mxu0 %v1600
    %1717 = vmatpush1.msra.mxu0 %v1599
    %1718 = vmatprep.subr.mxu0 %v1637
    %1719 = vmatpush1.msra.mxu0 %v1634
    %1720 = vmatprep.subr.mxu0 0.0
    %1721 = vmatpush1.msra.mxu0 0.0
    %1722 = vmatprep.subr.mxu0 0.0
    %1723 = vmatpush1.msra.mxu0 0.0
    %1724 = vmatprep.subr.mxu0 0.0
    %1725 = vmatpush1.msra.mxu0 0.0
    %1726 = vmatprep.subr.mxu0 0.0
    %1727 = vmatpush1.msra.mxu0 0.0
    %1728 = vmatprep.subr.mxu0 0.0
    %1729 = vmatpush1.msra.mxu0 0.0
    %1730 = vmatprep.subr.mxu0 0.0
    %1731 = vmatpush1.msra.mxu0 0.0
    %1732 = vmatprep.subr.mxu0 0.0
    %1733 = vmatpush1.msra.mxu0 0.0
    %1734 = vmatprep.subr.mxu0 0.0
    %1735 = vmatpush1.msra.mxu0 0.0
    %1736 = vmatprep.subr.mxu0 0.0
    %1737 = vmatpush1.msra.mxu0 0.0
    %1738 = vmatprep.subr.mxu0 0.0
    %1739 = vmatpush1.msra.mxu0 0.0
    %1740 = vmatprep.subr.mxu0 0.0
    %1741 = vmatpush1.msra.mxu0 0.0
    %1742 = vmatprep.subr.mxu0 0.0
    %1743 = vmatpush1.msra.mxu0 0.0
    %1744 = vmatprep.subr.mxu0 0.0
    %1745 = vmatpush1.msra.mxu0 0.0
    %1746 = vmatprep.subr.mxu0 0.0
    %1747 = vmatpush1.msra.mxu0 0.0
    %1748 = vmatprep.subr.mxu0 0.0
    %1749 = vmatpush1.msra.mxu0 0.0
    %1750 = vmatprep.subr.mxu0 0.0
    %1751 = vmatpush1.msra.mxu0 0.0
    %1752 = vmatprep.subr.mxu0 0.0
    %1753 = vmatpush1.msra.mxu0 0.0
    %1754 = vmatprep.subr.mxu0 0.0
    %1755 = vmatpush1.msra.mxu0 0.0
    %1756 = vmatprep.subr.mxu0 0.0
    %1757 = vmatpush1.msra.mxu0 0.0
    %1758 = vmatprep.subr.mxu0 0.0
    %1759 = vmatpush1.msra.mxu0 0.0
    %1760 = vmatprep.subr.mxu0 0.0
    %1761 = vmatpush1.msra.mxu0 0.0
    %1762 = vmatprep.subr.mxu0 0.0
    %1763 = vmatpush1.msra.mxu0 0.0
    %1764 = vmatprep.subr.mxu0 0.0
    %1765 = vmatpush1.msra.mxu0 0.0
    %1766 = vmatprep.subr.mxu0 0.0
    %1767 = vmatpush1.msra.mxu0 0.0
    %1768 = vmatprep.subr.mxu0 0.0
    %1769 = vmatpush1.msra.mxu0 0.0
    %1770 = vmatprep.subr.mxu0 0.0
    %1771 = vmatpush1.msra.mxu0 0.0
    %1772 = vmatprep.subr.mxu0 0.0
    %1773 = vmatpush1.msra.mxu0 0.0
    %1774 = vmatprep.subr.mxu0 0.0
    %1775 = vmatpush1.msra.mxu0 0.0
    %1776 = vmatprep.subr.mxu0 0.0
    %1777 = vmatpush1.msra.mxu0 0.0
    %1778 = vmatprep.subr.mxu0 0.0
    %1779 = vmatpush1.msra.mxu0 0.0
    %1780 = vmatprep.mubr.f32.mxu0 0.0
    %1781 = vmatmul.mubr.f32.gmra.mrb[0].mxu0 %v1622
    %v1782 = vpop.f32.mrb[0].mxu0
    %v1783 = vadd.f32 %v1614, %v1782
    %v1784 = vpop.f32.mrb[0].mxu0
    %v1785 = vadd.f32 %v1614, %v1784
    %1786 = vmatprep.mubr.f32.mxu0 0.0
    %1787 = vmatmul.mubr.f32.gmra.mrb[0].mxu0 %v1625
    %v1788 = vpop.f32.mrb[0].mxu0
    %v1789 = vadd.f32 %v1619, %v1788
    %v1790 = vpop.f32.mrb[0].mxu0
    %v1791 = vadd.f32 %v1619, %v1790
    %1792 = vdwg.mxu0
    %v1793 = vsel %vm99, %v1712, -inf
    %v1794 = vmax.f32 %v1706, %v1793
    %v1795 = vrot.slane %v1794, 4
    %v1796 = vmax.f32 %v1794, %v1795
    %v1797 = vrot.slane %v1796, 2
    %v1798 = vmax.f32 %v1796, %v1797
    %v1799 = vrot.slane %v1798, 1
    %v1800 = vmax.f32 %v1798, %v1799
    %v1801 = vsel %vm99, %v1714, -inf
    %v1802 = vmax.f32 %v1708, %v1801
    %v1803 = vrot.slane %v1802, 4
    %v1804 = vmax.f32 %v1802, %v1803
    %v1805 = vrot.slane %v1804, 2
    %v1806 = vmax.f32 %v1804, %v1805
    %v1807 = vrot.slane %v1806, 1
    %v1808 = vmax.f32 %v1806, %v1807
    %v1809 = vsel %vm99, %v1789, -inf
    %v1810 = vmax.f32 %v1783, %v1809
    %v1811 = vrot.slane %v1810, 4
    %v1812 = vmax.f32 %v1810, %v1811
    %v1813 = vrot.slane %v1812, 2
    %v1814 = vmax.f32 %v1812, %v1813
    %v1815 = vrot.slane %v1814, 1
    %v1816 = vmax.f32 %v1814, %v1815
    %v1817 = vsel %vm99, %v1791, -inf
    %v1818 = vmax.f32 %v1785, %v1817
    %v1819 = vrot.slane %v1818, 4
    %v1820 = vmax.f32 %v1818, %v1819
    %v1821 = vrot.slane %v1820, 2
    %v1822 = vmax.f32 %v1820, %v1821
    %v1823 = vrot.slane %v1822, 1
    %v1824 = vmax.f32 %v1822, %v1823
    %v1825 = vsub.f32 %v1706, %v1800
    %v1826 = vsub.f32 %v1708, %v1808
    %v1827 = vsub.f32 %v1783, %v1816
    %v1828 = vsub.f32 %v1785, %v1824
    %v1829 = vsub.f32 %v1712, %v1800
    %v1830 = vsub.f32 %v1714, %v1808
    %v1831 = vsub.f32 %v1789, %v1816
    %v1832 = vsub.f32 %v1791, %v1824
    %v1833 = vmul.f32 %v1825, 1.442695
    %v1834 = vpow.pop %v1833
    %v1835 = vmul.f32 %v1826, 1.442695
    %v1836 = vpow.pop %v1835
    %v1837 = vmul.f32 %v1827, 1.442695
    %v1838 = vpow.pop %v1837
    %v1839 = vmul.f32 %v1828, 1.442695
    %v1840 = vpow.pop %v1839
    %v1841 = vmul.f32 %v1829, 1.442695
    %v1842 = vpow.pop %v1841
    %v1843 = vmul.f32 %v1830, 1.442695
    %v1844 = vpow.pop %v1843
    %v1845 = vmul.f32 %v1831, 1.442695
    %v1846 = vpow.pop %v1845
    %v1847 = vmul.f32 %v1832, 1.442695
    %v1848 = vpow.pop %v1847
    %v1849 = vsel %vm99, %v1842, 0.0
    %v1850 = vadd.f32 %v1834, %v1849
    %v1851 = vrot.slane %v1850, 4
    %v1852 = vadd.f32 %v1850, %v1851
    %v1853 = vrot.slane %v1852, 2
    %v1854 = vadd.f32 %v1852, %v1853
    %v1855 = vrot.slane %v1854, 1
    %v1856 = vadd.f32 %v1854, %v1855
    %v1857 = vsel %vm99, %v1844, 0.0
    %v1858 = vadd.f32 %v1836, %v1857
    %v1859 = vrot.slane %v1858, 4
    %v1860 = vadd.f32 %v1858, %v1859
    %v1861 = vrot.slane %v1860, 2
    %v1862 = vadd.f32 %v1860, %v1861
    %v1863 = vrot.slane %v1862, 1
    %v1864 = vadd.f32 %v1862, %v1863
    %v1865 = vsel %vm99, %v1846, 0.0
    %v1866 = vadd.f32 %v1838, %v1865
    %v1867 = vrot.slane %v1866, 4
    %v1868 = vadd.f32 %v1866, %v1867
    %v1869 = vrot.slane %v1868, 2
    %v1870 = vadd.f32 %v1868, %v1869
    %v1871 = vrot.slane %v1870, 1
    %v1872 = vadd.f32 %v1870, %v1871
    %v1873 = vsel %vm99, %v1848, 0.0
    %v1874 = vadd.f32 %v1840, %v1873
    %v1875 = vrot.slane %v1874, 4
    %v1876 = vadd.f32 %v1874, %v1875
    %v1877 = vrot.slane %v1876, 2
    %v1878 = vadd.f32 %v1876, %v1877
    %v1879 = vrot.slane %v1878, 1
    %v1880 = vadd.f32 %v1878, %v1879
    %v1881 = vrcp.pop %v1856
    %v1882 = vrcp.pop %v1864
    %v1883 = vrcp.pop %v1872
    %v1884 = vrcp.pop %v1880
    %v1885 = vmul.f32 %v1834, %v1881
    %v1886 = vmul.f32 %v1836, %v1882
    %v1887 = vmul.f32 %v1838, %v1883
    %v1888 = vmul.f32 %v1840, %v1884
    %v1889 = vmul.f32 %v1842, %v1881
    %v1890 = vmul.f32 %v1844, %v1882
    %v1891 = vmul.f32 %v1846, %v1883
    %v1892 = vmul.f32 %v1848, %v1884
    %v1893 = vmax.f32 %v1706, %v1708
    %1894 = vmax.xlane.f32.xlu0 %v1893
    %v1895 = vpop.xlane.xlu0 %1894
    %v1896 = vmax.f32 %v1793, %v1801
    %1897 = vmax.xlane.f32.xlu0 %v1896
    %v1898 = vpop.xlane.xlu0 %1897
    %v1899 = vsub.f32 %v1706, %v1895
    %v1900 = vsub.f32 %v1708, %v1895
    %v1901 = vsub.f32 %v1712, %v1898
    %v1902 = vsub.f32 %v1714, %v1898
    %v1903 = vmul.f32 %v1899, 1.442695
    %v1904 = vpow.pop %v1903
    %v1905 = vmul.f32 %v1900, 1.442695
    %v1906 = vpow.pop %v1905
    %v1907 = vmul.f32 %v1901, 1.442695
    %v1908 = vpow.pop %v1907
    %v1909 = vmul.f32 %v1902, 1.442695
    %v1910 = vpow.pop %v1909
    %v1911 = vadd.f32 %v1904, %v1906
    %1912 = vadd.xlane.f32.xlu0 %v1911
    %v1913 = vpop.xlane.xlu0 %1912
    %v1914 = vsel %vm99, %v1908, 0.0
    %v1915 = vsel %vm99, %v1910, 0.0
    %v1916 = vadd.f32 %v1914, %v1915
    %1917 = vadd.xlane.f32.xlu0 %v1916
    %v1918 = vpop.xlane.xlu0 %1917
    %v1919 = vrcp.pop %v1913
    %v1920 = vrcp.pop %v1918
    %v1921 = vmul.f32 %v1904, %v1919
    %v1922 = vmul.f32 %v1906, %v1919
    %v1923 = vmul.f32 %v1908, %v1920
    %v1924 = vmul.f32 %v1910, %v1920
    %v1925 = vmax.f32 %v1783, %v1785
    %1926 = vmax.xlane.f32.xlu0 %v1925
    %v1927 = vpop.xlane.xlu0 %1926
    %v1928 = vmax.f32 %v1809, %v1817
    %1929 = vmax.xlane.f32.xlu0 %v1928
    %v1930 = vpop.xlane.xlu0 %1929
    %v1931 = vsub.f32 %v1783, %v1927
    %v1932 = vsub.f32 %v1785, %v1927
    %v1933 = vsub.f32 %v1789, %v1930
    %v1934 = vsub.f32 %v1791, %v1930
    %v1935 = vmul.f32 %v1931, 1.442695
    %v1936 = vpow.pop %v1935
    %v1937 = vmul.f32 %v1932, 1.442695
    %v1938 = vpow.pop %v1937
    %v1939 = vmul.f32 %v1933, 1.442695
    %v1940 = vpow.pop %v1939
    %v1941 = vmul.f32 %v1934, 1.442695
    %v1942 = vpow.pop %v1941
    %v1943 = vadd.f32 %v1936, %v1938
    %1944 = vadd.xlane.f32.xlu0 %v1943
    %v1945 = vpop.xlane.xlu0 %1944
    %v1946 = vsel %vm99, %v1940, 0.0
    %v1947 = vsel %vm99, %v1942, 0.0
    %v1948 = vadd.f32 %v1946, %v1947
    %1949 = vadd.xlane.f32.xlu0 %v1948
    %v1950 = vpop.xlane.xlu0 %1949
    %v1951 = vrcp.pop %v1945
    %v1952 = vrcp.pop %v1950
    %v1953 = vmul.f32 %v1936, %v1951
    %v1954 = vmul.f32 %v1938, %v1951
    %v1955 = vmul.f32 %v1940, %v1952
    %v1956 = vmul.f32 %v1942, %v1952
    %v1957 = vadd.f32 %v1885, %v1921
    %v1958 = vadd.f32 %v1886, %v1922
    %v1959 = vadd.f32 %v1887, %v1953
    %v1960 = vadd.f32 %v1888, %v1954
    %v1961 = vadd.f32 %v1889, %v1923
    %v1962 = vadd.f32 %v1890, %v1924
    %v1963 = vadd.f32 %v1891, %v1955
    %v1964 = vadd.f32 %v1892, %v1956
    %v1965 = vmul.f32 %v964, %v1957
    %v1966 = vmul.f32 %v966, %v1958
    %v1967 = vmul.f32 %v1053, %v1959
    %v1968 = vmul.f32 %v1055, %v1960
    %v1969 = vmul.f32 %v970, %v1961
    %v1970 = vmul.f32 %v972, %v1962
    %v1971 = vmul.f32 %v1059, %v1963
    %v1972 = vmul.f32 %v1061, %v1964
    %s1973 = scalar_lea.vmem %s1, 32
    %v1974 = vld [vmem:[%s1973] sm:$0xff]
    %v1975 = vld [vmem:[%s1973 + $0x8] sm:$0xf]
    %s1976 = scalar_lea.vmem %s4, 64
    %v1977 = vld [vmem:[%s1976] sm:$0xff]
    %v1978 = vld [vmem:[%s1976 + $0x8] sm:$0xf]
    %1980 = vset.pattern.permute.xlu0 0
    %1981 = vperm.xlu0 %1980, %v1977
    %v1982 = vpop.permute.xlu0 %1981
    %1985 = vset.pattern.permute.xlu0 0
    %1986 = vperm.xlu0 %1985, %v1978
    %v1987 = vpop.permute.xlu0 %1986
    %v1990 = vsel %vm92, %v1974, 0
    %v1993 = vsel %vm92, %v1975, 0
    %v1996 = vsel %vm99, %v1969, 0
    %v1999 = vsel %vm99, %v1970, 0
    %v2002 = vsel %vm99, %v1971, 0
    %v2005 = vsel %vm99, %v1972, 0
    %2007 = vmatprep.subr.mxu0 %v1966
    %2008 = vmatpush1.msra.mxu0 %v1965
    %2009 = vmatprep.subr.mxu0 %v1999
    %2010 = vmatpush1.msra.mxu0 %v1996
    %2011 = vmatprep.subr.mxu0 0.0
    %2012 = vmatpush1.msra.mxu0 0.0
    %2013 = vmatprep.subr.mxu0 0.0
    %2014 = vmatpush1.msra.mxu0 0.0
    %2015 = vmatprep.subr.mxu0 0.0
    %2016 = vmatpush1.msra.mxu0 0.0
    %2017 = vmatprep.subr.mxu0 0.0
    %2018 = vmatpush1.msra.mxu0 0.0
    %2019 = vmatprep.subr.mxu0 0.0
    %2020 = vmatpush1.msra.mxu0 0.0
    %2021 = vmatprep.subr.mxu0 0.0
    %2022 = vmatpush1.msra.mxu0 0.0
    %2023 = vmatprep.subr.mxu0 0.0
    %2024 = vmatpush1.msra.mxu0 0.0
    %2025 = vmatprep.subr.mxu0 0.0
    %2026 = vmatpush1.msra.mxu0 0.0
    %2027 = vmatprep.subr.mxu0 0.0
    %2028 = vmatpush1.msra.mxu0 0.0
    %2029 = vmatprep.subr.mxu0 0.0
    %2030 = vmatpush1.msra.mxu0 0.0
    %2031 = vmatprep.subr.mxu0 0.0
    %2032 = vmatpush1.msra.mxu0 0.0
    %2033 = vmatprep.subr.mxu0 0.0
    %2034 = vmatpush1.msra.mxu0 0.0
    %2035 = vmatprep.subr.mxu0 0.0
    %2036 = vmatpush1.msra.mxu0 0.0
    %2037 = vmatprep.subr.mxu0 0.0
    %2038 = vmatpush1.msra.mxu0 0.0
    %2039 = vmatprep.subr.mxu0 0.0
    %2040 = vmatpush1.msra.mxu0 0.0
    %2041 = vmatprep.subr.mxu0 0.0
    %2042 = vmatpush1.msra.mxu0 0.0
    %2043 = vmatprep.subr.mxu0 0.0
    %2044 = vmatpush1.msra.mxu0 0.0
    %2045 = vmatprep.subr.mxu0 0.0
    %2046 = vmatpush1.msra.mxu0 0.0
    %2047 = vmatprep.subr.mxu0 0.0
    %2048 = vmatpush1.msra.mxu0 0.0
    %2049 = vmatprep.subr.mxu0 0.0
    %2050 = vmatpush1.msra.mxu0 0.0
    %2051 = vmatprep.subr.mxu0 0.0
    %2052 = vmatpush1.msra.mxu0 0.0
    %2053 = vmatprep.subr.mxu0 0.0
    %2054 = vmatpush1.msra.mxu0 0.0
    %2055 = vmatprep.subr.mxu0 0.0
    %2056 = vmatpush1.msra.mxu0 0.0
    %2057 = vmatprep.subr.mxu0 0.0
    %2058 = vmatpush1.msra.mxu0 0.0
    %2059 = vmatprep.subr.mxu0 0.0
    %2060 = vmatpush1.msra.mxu0 0.0
    %2061 = vmatprep.subr.mxu0 0.0
    %2062 = vmatpush1.msra.mxu0 0.0
    %2063 = vmatprep.subr.mxu0 0.0
    %2064 = vmatpush1.msra.mxu0 0.0
    %2065 = vmatprep.subr.mxu0 0.0
    %2066 = vmatpush1.msra.mxu0 0.0
    %2067 = vmatprep.subr.mxu0 0.0
    %2068 = vmatpush1.msra.mxu0 0.0
    %2069 = vmatprep.subr.mxu0 0.0
    %2070 = vmatpush1.msra.mxu0 0.0
    %2071 = vmatprep.mubr.f32.mxu0 0.0
    %2072 = vmatmul.mubr.f32.gmra.mrb[0].mxu0 %v1990
    %v2073 = vpop.f32.mrb[0].mxu0
    %v2074 = vadd.f32 %v1982, %v2073
    %v2075 = vpop.f32.mrb[0].mxu0
    %v2076 = vadd.f32 %v1982, %v2075
    %2077 = vmatprep.mubr.f32.mxu0 0.0
    %2078 = vmatmul.mubr.f32.gmra.mrb[0].mxu0 %v1993
    %v2079 = vpop.f32.mrb[0].mxu0
    %v2080 = vadd.f32 %v1987, %v2079
    %v2081 = vpop.f32.mrb[0].mxu0
    %v2082 = vadd.f32 %v1987, %v2081
    %2083 = vdwg.mxu0
    %2084 = vmatprep.subr.mxu0 %v1968
    %2085 = vmatpush1.msra.mxu0 %v1967
    %2086 = vmatprep.subr.mxu0 %v2005
    %2087 = vmatpush1.msra.mxu0 %v2002
    %2088 = vmatprep.subr.mxu0 0.0
    %2089 = vmatpush1.msra.mxu0 0.0
    %2090 = vmatprep.subr.mxu0 0.0
    %2091 = vmatpush1.msra.mxu0 0.0
    %2092 = vmatprep.subr.mxu0 0.0
    %2093 = vmatpush1.msra.mxu0 0.0
    %2094 = vmatprep.subr.mxu0 0.0
    %2095 = vmatpush1.msra.mxu0 0.0
    %2096 = vmatprep.subr.mxu0 0.0
    %2097 = vmatpush1.msra.mxu0 0.0
    %2098 = vmatprep.subr.mxu0 0.0
    %2099 = vmatpush1.msra.mxu0 0.0
    %2100 = vmatprep.subr.mxu0 0.0
    %2101 = vmatpush1.msra.mxu0 0.0
    %2102 = vmatprep.subr.mxu0 0.0
    %2103 = vmatpush1.msra.mxu0 0.0
    %2104 = vmatprep.subr.mxu0 0.0
    %2105 = vmatpush1.msra.mxu0 0.0
    %2106 = vmatprep.subr.mxu0 0.0
    %2107 = vmatpush1.msra.mxu0 0.0
    %2108 = vmatprep.subr.mxu0 0.0
    %2109 = vmatpush1.msra.mxu0 0.0
    %2110 = vmatprep.subr.mxu0 0.0
    %2111 = vmatpush1.msra.mxu0 0.0
    %2112 = vmatprep.subr.mxu0 0.0
    %2113 = vmatpush1.msra.mxu0 0.0
    %2114 = vmatprep.subr.mxu0 0.0
    %2115 = vmatpush1.msra.mxu0 0.0
    %2116 = vmatprep.subr.mxu0 0.0
    %2117 = vmatpush1.msra.mxu0 0.0
    %2118 = vmatprep.subr.mxu0 0.0
    %2119 = vmatpush1.msra.mxu0 0.0
    %2120 = vmatprep.subr.mxu0 0.0
    %2121 = vmatpush1.msra.mxu0 0.0
    %2122 = vmatprep.subr.mxu0 0.0
    %2123 = vmatpush1.msra.mxu0 0.0
    %2124 = vmatprep.subr.mxu0 0.0
    %2125 = vmatpush1.msra.mxu0 0.0
    %2126 = vmatprep.subr.mxu0 0.0
    %2127 = vmatpush1.msra.mxu0 0.0
    %2128 = vmatprep.subr.mxu0 0.0
    %2129 = vmatpush1.msra.mxu0 0.0
    %2130 = vmatprep.subr.mxu0 0.0
    %2131 = vmatpush1.msra.mxu0 0.0
    %2132 = vmatprep.subr.mxu0 0.0
    %2133 = vmatpush1.msra.mxu0 0.0
    %2134 = vmatprep.subr.mxu0 0.0
    %2135 = vmatpush1.msra.mxu0 0.0
    %2136 = vmatprep.subr.mxu0 0.0
    %2137 = vmatpush1.msra.mxu0 0.0
    %2138 = vmatprep.subr.mxu0 0.0
    %2139 = vmatpush1.msra.mxu0 0.0
    %2140 = vmatprep.subr.mxu0 0.0
    %2141 = vmatpush1.msra.mxu0 0.0
    %2142 = vmatprep.subr.mxu0 0.0
    %2143 = vmatpush1.msra.mxu0 0.0
    %2144 = vmatprep.subr.mxu0 0.0
    %2145 = vmatpush1.msra.mxu0 0.0
    %2146 = vmatprep.subr.mxu0 0.0
    %2147 = vmatpush1.msra.mxu0 0.0
    %2148 = vmatprep.mubr.f32.mxu0 0.0
    %2149 = vmatmul.mubr.f32.gmra.mrb[0].mxu0 %v1990
    %v2150 = vpop.f32.mrb[0].mxu0
    %v2151 = vadd.f32 %v1982, %v2150
    %v2152 = vpop.f32.mrb[0].mxu0
    %v2153 = vadd.f32 %v1982, %v2152
    %2154 = vmatprep.mubr.f32.mxu0 0.0
    %2155 = vmatmul.mubr.f32.gmra.mrb[0].mxu0 %v1993
    %v2156 = vpop.f32.mrb[0].mxu0
    %v2157 = vadd.f32 %v1987, %v2156
    %v2158 = vpop.f32.mrb[0].mxu0
    %v2159 = vadd.f32 %v1987, %v2158
    %2160 = vdwg.mxu0
    %2161 = vst [vmem:[#allocation2] sm:$0xff] %v2074
    %2162 = vst [vmem:[#allocation2 + $0x8] sm:$0xff] %v2076
    %2163 = vst [vmem:[#allocation2 + $0x10] sm:$0xff] %v2151
    %2164 = vst [vmem:[#allocation2 + $0x18] sm:$0xff] %v2153
    %2165 = vst [vmem:[#allocation2 + $0x20] sm:$0xf] %v2080
    %2166 = vst [vmem:[#allocation2 + $0x28] sm:$0xf] %v2082
    %2167 = vst [vmem:[#allocation2 + $0x30] sm:$0xf] %v2157
    %2168 = vst [vmem:[#allocation2 + $0x38] sm:$0xf] %v2159
    // Predicated region
    $region22: #{tpu_custom_call.1} parent=1 // pred_check
      _
    $region23: #{tpu_custom_call.1} parent=1 // pred_check_branch
      %2170 = sbr.rel (0) target = $region25
    $region24: #{tpu_custom_call.1} parent=1 // pred_region
      %s2172 = ssub.s32 1024, 1024
      %2173 = vsyncadd [#allocation3], %s2172
      %s2174 = sshll.u32 [#allocation2], 4
      %s2175 = int_to_ptr.vmem [resolvable:$true] %s2174
      %2180 = dma.vmem_to_hbm [thread:$0]  %s2175, 1024, %s5, [#allocation3], 512, 512, 32
    $region25: #{tpu_custom_call.1} parent=1 // pred_fallthru
      _
    // Predicated region
    $region26: #{tpu_custom_call.1} parent=1 // pred_check
      _
    $region27: #{tpu_custom_call.1} parent=1 // pred_check_branch
      %2182 = sbr.rel (0) target = $region29
    $region28: #{tpu_custom_call.1} parent=1 // pred_region
      %2183 = dma.done [#allocation3], 1024
    $region29: #{tpu_custom_call.1} parent=1 // pred_fallthru
      _
    %2184 = vsyncpa [#allocation3], 1

</llo_original>
